<compile_context>
chip_gen: v7x
topology: tpu7x:2x2x1
jax: 0.10.0
libtpu: 0.0.40
codegen_flags: <defaults>
</compile_context>

<pallas_src>
import numpy as np
import jax
import jax.numpy as jnp
from jax import lax
from jax.experimental import pallas as pl
from jax.experimental.pallas import tpu as pltpu

# ---------------------------------------------------------------------------- configuration
B, C, H, W = 2, 4, 16, 16          # batch, channels, spatial of the feature map fed to the IC
HEADS = 2                          # heads_per_ensemble
NUM_CLASSES = 10
POOL = 4                           # args.size_after_pool
K = H // POOL                      # SDNPool kernel size (16 / 4 = 4)
HC = HEADS * C                     # fused conv output channels (both heads) = 8
FEAT = C * POOL * POOL             # per-head FC input dim = 64
KIN = 3 * (W + 2) * C + 1          # conv-GEMM contraction: 3 padded input rows + bias col = 217
FEAT_SP = POOL * W * HC            # FC contraction dim (ph, pw, kw, head, c) = 512
OUT_PAD = 128                      # lane-dense padded logits width (>= HEADS * NUM_CLASSES)
NUM_ICS = 4                        # internal classifiers stacked behind one pallas_call


# ---------------------------------------------------------------------------- fused kernel
def fused_kernel(lhs_ref, wconv_ref, alpha_ref, wfc_ref, bfc_ref, out_ref):
    # lhs_ref  : (B*H, KIN)      rows = (b, i); cols = (kh, jp, cin) + ones column (bias)
    # wconv_ref: (KIN, W*HC)     conv weights of BOTH heads expanded over the W output
    #                            columns (block matrix), bias folded into the last row
    # alpha_ref: (1, W*HC)       per-head SDNPool alpha, broadcast over (j, head, c) lanes
    # wfc_ref  : (FEAT_SP, 128)  both heads' FC weights, block-diagonal over heads; rows at
    #                            kw != 0 lane positions are zero (absorbs pooling sparsity)
    # bfc_ref  : (1, 128)        FC bias (cols h*10+cls), zero padded
    # out_ref  : (B, 128)        lane-dense padded logits slab

    # Conv2d(C, C, 3, s=1, p=1) + bias + ReLU for BOTH heads as ONE lane-dense MXU GEMM.
    # Output rows = (b, i), lanes = (j, head, cout) -> already a (32, 128) full-vreg tile.
    y = jnp.maximum(
        jnp.dot(lhs_ref[...], wconv_ref[...], preferred_element_type=jnp.float32), 0.0)

    # SDNPool vertical (kh) reduce: non-overlapping groups of K=4 rows -> (B*POOL, 128).
    y4 = y.reshape(B * POOL, K, W * HC)
    mx = jnp.max(y4, axis=1)
    sm = jnp.sum(y4, axis=1)

    # SDNPool horizontal (kw) reduce: lane-group tree reduce (pltpu.roll + VPU, full vregs).
    # roll(x, 120)[l] = x[l+8], roll(x, 112)[l] = x[l+16]; after two steps the lane at kw==0
    # of each 32-lane (pw) group holds the reduction over the 4 kw positions.
    mx = jnp.maximum(mx, pltpu.roll(mx, W * HC - HC, axis=1))
    mx = jnp.maximum(mx, pltpu.roll(mx, W * HC - 2 * HC, axis=1))
    sm = sm + pltpu.roll(sm, W * HC - HC, axis=1)
    sm = sm + pltpu.roll(sm, W * HC - 2 * HC, axis=1)

    # alpha * MaxPool + (1 - alpha) * AvgPool, rewritten as av + a*(mx - av).
    av = sm * (1.0 / (K * K))
    mixed = av + alpha_ref[...] * (mx - av)                      # (8, 128)

    # Both heads' Linear(64 -> 10) as one lane-dense GEMM; kw != 0 lanes carry partial
    # reductions but the corresponding FC weight rows are zero, so no lane compaction.
    flat = mixed.reshape(B, FEAT_SP)                             # (2, 512)
    out_ref[...] = (
        jnp.dot(flat, wfc_ref[...], preferred_element_type=jnp.float32) + bfc_ref[...])


# ---------------------------------------------------------------------------- wrapper
def build_lhs(x_nchw):
    """NCHW -> padded NHWC -> (NUM_ICS, B*H, KIN) conv-GEMM LHS (3 row slabs + ones column)."""
    xp = jnp.pad(jnp.transpose(x_nchw, (0, 1, 3, 4, 2)),
                 ((0, 0), (0, 0), (1, 1), (1, 1), (0, 0)))       # (NI, B, H+2, W+2, C)
    rows = jnp.concatenate(
        [xp[:, :, kh:kh + H].reshape(NUM_ICS, B, H, (W + 2) * C) for kh in range(3)],
        axis=-1)                                                  # (NI, B, H, 3*(W+2)*C)
    ones = jnp.ones((NUM_ICS, B, H, 1), jnp.float32)              # bias column
    return jnp.concatenate([rows, ones], axis=-1).reshape(NUM_ICS, B * H, KIN)


@jax.jit
def internal_classifier_forward(x_nchw, wconv_k, alpha_k, wfc_k, bfc_k):
    lhs = build_lhs(x_nchw)   # producer allowed to fuse into the pallas_call (input 0)
    return pl.pallas_call(
        fused_kernel,
        out_shape=jax.ShapeDtypeStruct((NUM_ICS, B, OUT_PAD), jnp.float32),
        grid=(NUM_ICS,),
        in_specs=[
            pl.BlockSpec((None, B * H, KIN), lambda i: (i, 0, 0)),
            pl.BlockSpec((None, KIN, W * HC), lambda i: (i, 0, 0)),
            pl.BlockSpec((None, 1, W * HC), lambda i: (i, 0, 0)),
            pl.BlockSpec((None, FEAT_SP, OUT_PAD), lambda i: (i, 0, 0)),
            pl.BlockSpec((None, 1, OUT_PAD), lambda i: (i, 0, 0)),
        ],
        out_specs=pl.BlockSpec((None, B, OUT_PAD), lambda i: (i, 0, 0)),
        compiler_params=pltpu.CompilerParams(
            dimension_semantics=("parallel",),                    # shard ICs across TCs (v7x)
            allow_input_fusion=[True, False, False, False, False],
        ),
    )(lhs, wconv_k, alpha_k, wfc_k, bfc_k)


# ---------------------------------------------------------------------------- param packing
def pack_params(conv_w, conv_b, alpha, fc_w, fc_b):
    """Host-side (numpy) repacking of PyTorch-layout params into the fused kernel layouts."""
    conv_w = np.asarray(conv_w, np.float32)   # (NI, HEADS, Cout, Cin, 3, 3)  OIHW per head
    conv_b = np.asarray(conv_b, np.float32)   # (NI, HEADS, C)
    alpha = np.asarray(alpha, np.float32)     # (NI, HEADS)
    fc_w = np.asarray(fc_w, np.float32)       # (NI, HEADS, 10, 64)  in-features NCHW flatten
    fc_b = np.asarray(fc_b, np.float32)       # (NI, HEADS, 10)

    # Conv as a lane-dense GEMM: row = kh*(W+2)*C + jp*C + cin (+ bias row), col = j*HC+head*C+co.
    wconv = np.zeros((NUM_ICS, KIN, W * HC), np.float32)
    for h in range(HEADS):
        for kh in range(3):
            for kw in range(3):
                blk = np.transpose(conv_w[:, h, :, :, kh, kw], (0, 2, 1))   # (NI, cin, cout)
                for j in range(W):
                    r0 = kh * (W + 2) * C + (j + kw) * C
                    c0 = j * HC + h * C
                    wconv[:, r0:r0 + C, c0:c0 + C] = blk
        for j in range(W):                                                   # folded conv bias
            c0 = j * HC + h * C
            wconv[:, KIN - 1, c0:c0 + C] = conv_b[:, h, :]

    # Per-head alpha broadcast over (j, head, c) lanes.
    alpha_k = np.zeros((NUM_ICS, 1, W * HC), np.float32)
    for h in range(HEADS):
        for j in range(W):
            c0 = j * HC + h * C
            alpha_k[:, 0, c0:c0 + C] = alpha[:, h:h + 1]

    # FC: block-diagonal over heads; rows indexed by g = ph*128 + pw*32 + head*C + c
    # (the kw == 0 lane positions); all other rows stay zero.
    wfc = np.zeros((NUM_ICS, FEAT_SP, OUT_PAD), np.float32)
    fc_w_r = fc_w.reshape(NUM_ICS, HEADS, NUM_CLASSES, C, POOL, POOL)        # (ni,h,cls,c,ph,pw)
    for h in range(HEADS):
        for ph in range(POOL):
            for pw in range(POOL):
                for c in range(C):
                    g = ph * (W * HC) + pw * (K * HC) + h * C + c
                    wfc[:, g, h * NUM_CLASSES:(h + 1) * NUM_CLASSES] = fc_w_r[:, h, :, c, ph, pw]

    bfc = np.zeros((NUM_ICS, 1, OUT_PAD), np.float32)
    bfc[:, 0, :HEADS * NUM_CLASSES] = fc_b.reshape(NUM_ICS, HEADS * NUM_CLASSES)

    return (jnp.asarray(wconv), jnp.asarray(alpha_k), jnp.asarray(wfc), jnp.asarray(bfc))


# ---------------------------------------------------------------------------- pure-JAX reference
def ref_forward(x, conv_w, conv_b, alpha, fc_w, fc_b):
    """One IC, NCHW, mirrors the PyTorch forward exactly. Returns a list of per-head logits."""
    outs = []
    for h in range(HEADS):
        y = lax.conv_general_dilated(
            x, conv_w[h], window_strides=(1, 1), padding=((1, 1), (1, 1)),
            dimension_numbers=('NCHW', 'OIHW', 'NCHW'), precision=lax.Precision.HIGHEST)
        y = jnp.maximum(y + conv_b[h][None, :, None, None], 0.0)
        yb = y.reshape(B, C, POOL, K, POOL, K)
        mx = yb.max(axis=(3, 5))
        av = yb.mean(axis=(3, 5))
        mixed = alpha[h] * mx + (1.0 - alpha[h]) * av            # SDNPool
        flat = mixed.reshape(B, FEAT)                            # NCHW flatten (c, ph, pw)
        outs.append(jnp.dot(flat, fc_w[h].T, precision=lax.Precision.HIGHEST) + fc_b[h])
    return outs


# ---------------------------------------------------------------------------- main
if __name__ == "__main__":
    key = jax.random.PRNGKey(0)
    ks = jax.random.split(key, 6)

    # Deterministic synthetic inputs/params (PyTorch layouts), one set per stacked IC.
    x = jax.random.normal(ks[0], (NUM_ICS, B, C, H, W), jnp.float32)
    conv_w = jax.random.normal(ks[1], (NUM_ICS, HEADS, C, C, 3, 3), jnp.float32) * 0.1
    conv_b = jax.random.normal(ks[2], (NUM_ICS, HEADS, C), jnp.float32) * 0.1
    alpha = jax.random.uniform(ks[3], (NUM_ICS, HEADS), jnp.float32)     # torch.rand(1) per head
    fc_w = jax.random.normal(ks[4], (NUM_ICS, HEADS, NUM_CLASSES, FEAT), jnp.float32) * 0.1
    fc_b = jax.random.normal(ks[5], (NUM_ICS, HEADS, NUM_CLASSES), jnp.float32) * 0.1

    wconv_k, alpha_k, wfc_k, bfc_k = pack_params(conv_w, conv_b, alpha, fc_w, fc_b)

    out = internal_classifier_forward(x, wconv_k, alpha_k, wfc_k, bfc_k)
    out = jax.block_until_ready(out)                             # (NUM_ICS, B, 128) logits slab
    assert out.shape == (NUM_ICS, B, OUT_PAD)

    # Verify every IC / head against the pure-JAX NCHW reference.
    for n in range(NUM_ICS):
        refs = ref_forward(x[n], conv_w[n], conv_b[n], alpha[n], fc_w[n], fc_b[n])
        for h in range(HEADS):
            got = out[n, :, h * NUM_CLASSES:(h + 1) * NUM_CLASSES]
            err = float(jnp.max(jnp.abs(got - refs[h])))
            assert err < 1e-3, f"mismatch IC {n} head {h}: max abs err {err}"

    print("KERNEL_OK")
</pallas_src>

<mosaic_0001>
module attributes {stable_mosaic.version = 11 : i64} {
  func.func @fused_kernel(%arg0: i32, %arg1: memref<1x32x217xf32, #tpu.memory_space<vmem>>, %arg2: memref<1x217x128xf32, #tpu.memory_space<vmem>>, %arg3: memref<1x1x128xf32, #tpu.memory_space<vmem>>, %arg4: memref<1x512x128xf32, #tpu.memory_space<vmem>>, %arg5: memref<1x1x128xf32, #tpu.memory_space<vmem>>, %arg6: memref<1x2x128xf32, #tpu.memory_space<vmem>>) attributes {dimension_semantics = [#tpu.dimension_semantics<parallel>], iteration_bounds = array<i64: 4>, scalar_prefetch = 0 : i64, scratch_operands = 0 : i64, tpu.core_type = #tpu.core_type<tc>, window_params = [{transform_indices = @transform_0, window_bounds = array<i64: 1, 32, 217>}, {transform_indices = @transform_1, window_bounds = array<i64: 1, 217, 128>}, {transform_indices = @transform_2, window_bounds = array<i64: 1, 1, 128>}, {transform_indices = @transform_3, window_bounds = array<i64: 1, 512, 128>}, {transform_indices = @transform_4, window_bounds = array<i64: 1, 1, 128>}, {transform_indices = @transform_5, window_bounds = array<i64: 1, 2, 128>}]} {
    %c0 = arith.constant 0 : index
    %c0_0 = arith.constant 0 : index
    %c0_1 = arith.constant 0 : index
    %0 = vector.load %arg1[%c0, %c0_0, %c0_1] : memref<1x32x217xf32, #tpu.memory_space<vmem>>, vector<1x32x217xf32>
    %1 = vector.shape_cast %0 : vector<1x32x217xf32> to vector<32x217xf32>
    %c0_2 = arith.constant 0 : index
    %c0_3 = arith.constant 0 : index
    %c0_4 = arith.constant 0 : index
    %2 = vector.load %arg2[%c0_2, %c0_3, %c0_4] : memref<1x217x128xf32, #tpu.memory_space<vmem>>, vector<1x217x128xf32>
    %3 = vector.shape_cast %2 : vector<1x217x128xf32> to vector<217x128xf32>
    %cst = arith.constant dense<0.000000e+00> : vector<32x128xf32>
    %4 = tpu.matmul %1, %3, %cst {dimension_numbers = #tpu.dot_dimension_numbers<[1], [0], [0], [1], [0, 0, 1, 1], [], []>} : vector<32x217xf32>, vector<217x128xf32>, vector<32x128xf32> -> vector<32x128xf32>
    %cst_5 = arith.constant 0.000000e+00 : f32
    %5 = vector.broadcast %cst_5 : f32 to vector<32x128xf32>
    %6 = arith.maximumf %4, %5 : vector<32x128xf32>
    %7 = vector.shape_cast %6 : vector<32x128xf32> to vector<8x4x128xf32>
    %cst_6 = arith.constant dense<0xFF800000> : vector<8x128xf32>
    %8 = vector.multi_reduction <maximumf>, %7, %cst_6 [1] : vector<8x4x128xf32> to vector<8x128xf32>
    %cst_7 = arith.constant dense<0.000000e+00> : vector<8x128xf32>
    %9 = vector.multi_reduction <add>, %7, %cst_7 [1] : vector<8x4x128xf32> to vector<8x128xf32>
    %c120_i32 = arith.constant 120 : i32
    %10 = tpu.dynamic_rotate %8 by %c120_i32 dim 1 : vector<8x128xf32>, i32 -> vector<8x128xf32>
    %11 = arith.maximumf %8, %10 : vector<8x128xf32>
    %c112_i32 = arith.constant 112 : i32
    %12 = tpu.dynamic_rotate %11 by %c112_i32 dim 1 : vector<8x128xf32>, i32 -> vector<8x128xf32>
    %13 = arith.maximumf %11, %12 : vector<8x128xf32>
    %c120_i32_8 = arith.constant 120 : i32
    %14 = tpu.dynamic_rotate %9 by %c120_i32_8 dim 1 : vector<8x128xf32>, i32 -> vector<8x128xf32>
    %15 = arith.addf %9, %14 : vector<8x128xf32>
    %c112_i32_9 = arith.constant 112 : i32
    %16 = tpu.dynamic_rotate %15 by %c112_i32_9 dim 1 : vector<8x128xf32>, i32 -> vector<8x128xf32>
    %17 = arith.addf %15, %16 : vector<8x128xf32>
    %cst_10 = arith.constant 6.250000e-02 : f32
    %18 = vector.broadcast %cst_10 : f32 to vector<8x128xf32>
    %19 = arith.mulf %17, %18 : vector<8x128xf32>
    %c0_11 = arith.constant 0 : index
    %c0_12 = arith.constant 0 : index
    %c0_13 = arith.constant 0 : index
    %20 = vector.load %arg3[%c0_11, %c0_12, %c0_13] : memref<1x1x128xf32, #tpu.memory_space<vmem>>, vector<1x1x128xf32>
    %21 = vector.shape_cast %20 : vector<1x1x128xf32> to vector<1x128xf32>
    %22 = arith.subf %13, %19 : vector<8x128xf32>
    %23 = vector.broadcast %21 : vector<1x128xf32> to vector<8x128xf32>
    %24 = arith.mulf %23, %22 : vector<8x128xf32>
    %25 = arith.addf %19, %24 : vector<8x128xf32>
    %26 = vector.shape_cast %25 : vector<8x128xf32> to vector<2x512xf32>
    %c0_14 = arith.constant 0 : index
    %c0_15 = arith.constant 0 : index
    %c0_16 = arith.constant 0 : index
    %27 = vector.load %arg4[%c0_14, %c0_15, %c0_16] : memref<1x512x128xf32, #tpu.memory_space<vmem>>, vector<1x512x128xf32>
    %28 = vector.shape_cast %27 : vector<1x512x128xf32> to vector<512x128xf32>
    %cst_17 = arith.constant dense<0.000000e+00> : vector<2x128xf32>
    %29 = tpu.matmul %26, %28, %cst_17 {dimension_numbers = #tpu.dot_dimension_numbers<[1], [0], [0], [1], [0, 0, 1, 1], [], []>} : vector<2x512xf32>, vector<512x128xf32>, vector<2x128xf32> -> vector<2x128xf32>
    %c0_18 = arith.constant 0 : index
    %c0_19 = arith.constant 0 : index
    %c0_20 = arith.constant 0 : index
    %30 = vector.load %arg5[%c0_18, %c0_19, %c0_20] : memref<1x1x128xf32, #tpu.memory_space<vmem>>, vector<1x1x128xf32>
    %31 = vector.shape_cast %30 : vector<1x1x128xf32> to vector<1x128xf32>
    %32 = vector.broadcast %31 : vector<1x128xf32> to vector<2x128xf32>
    %33 = arith.addf %29, %32 : vector<2x128xf32>
    %c0_21 = arith.constant 0 : index
    %c0_22 = arith.constant 0 : index
    %c0_23 = arith.constant 0 : index
    %34 = vector.load %arg6[%c0_21, %c0_22, %c0_23] : memref<1x2x128xf32, #tpu.memory_space<vmem>>, vector<1x2x128xf32>
    %35 = vector.shape_cast %34 : vector<1x2x128xf32> to vector<2x128xf32>
    %36 = vector.shape_cast %33 : vector<2x128xf32> to vector<1x2x128xf32>
    tpu.vector_store %arg6[%c0_21, %c0_22, %c0_23], %36 {strides = array<i32>} : memref<1x2x128xf32, #tpu.memory_space<vmem>>, vector<1x2x128xf32>,
    return
  }
  func.func @transform_0(%arg0: i32) -> (i32, i32, i32) {
    %c0_i32 = arith.constant 0 : i32
    %c0_i32_0 = arith.constant 0 : i32
    %c0_i32_1 = arith.constant 0 : i32
    return %arg0, %c0_i32, %c0_i32_0 : i32, i32, i32
  }
  func.func @transform_1(%arg0: i32) -> (i32, i32, i32) {
    %c0_i32 = arith.constant 0 : i32
    %c0_i32_0 = arith.constant 0 : i32
    %c0_i32_1 = arith.constant 0 : i32
    return %arg0, %c0_i32, %c0_i32_0 : i32, i32, i32
  }
  func.func @transform_2(%arg0: i32) -> (i32, i32, i32) {
    %c0_i32 = arith.constant 0 : i32
    %c0_i32_0 = arith.constant 0 : i32
    %c0_i32_1 = arith.constant 0 : i32
    return %arg0, %c0_i32, %c0_i32_0 : i32, i32, i32
  }
  func.func @transform_3(%arg0: i32) -> (i32, i32, i32) {
    %c0_i32 = arith.constant 0 : i32
    %c0_i32_0 = arith.constant 0 : i32
    %c0_i32_1 = arith.constant 0 : i32
    return %arg0, %c0_i32, %c0_i32_0 : i32, i32, i32
  }
  func.func @transform_4(%arg0: i32) -> (i32, i32, i32) {
    %c0_i32 = arith.constant 0 : i32
    %c0_i32_0 = arith.constant 0 : i32
    %c0_i32_1 = arith.constant 0 : i32
    return %arg0, %c0_i32, %c0_i32_0 : i32, i32, i32
  }
  func.func @transform_5(%arg0: i32) -> (i32, i32, i32) {
    %c0_i32 = arith.constant 0 : i32
    %c0_i32_0 = arith.constant 0 : i32
    %c0_i32_1 = arith.constant 0 : i32
    return %arg0, %c0_i32, %c0_i32_0 : i32, i32, i32
  }
}

</mosaic_0001>

<llo_original>
// kernel: internal_classifier_forward.2
$region0: #{internal_classifier_forward.2}
  #allocation0 [shape = 'u32[]', space=smem, size = 0x4, offset = 0x4, fixed_abs, tag = 'smem constant byte address 0x4 - core index']
  #allocation1 [shape = 'u32[144,128]{1,0:T(1,128)}', space=vmem, size = 0x12000, scoped, tag = 'internal scratch']
  #allocation2 [shape = 'u32[2048]{0}', space=vmem, size = 0x2000, scoped, tag = 'scoped memory for internal_classifier_forward.2']
  #allocation3 [shape = 'u32[2048]{0}', space=vmem, size = 0x2000, scoped, tag = 'scoped memory for internal_classifier_forward.2']
  #allocation4 [shape = 'u32[2048]{0}', space=vmem, size = 0x2000, scoped, tag = 'scoped memory for internal_classifier_forward.2']
  #allocation5 [shape = 'u32[2048]{0}', space=vmem, size = 0x2000, scoped, tag = 'scoped memory for internal_classifier_forward.2']
  #allocation6 [shape = 'u32[2048]{0}', space=vmem, size = 0x2000, scoped, tag = 'scoped memory for internal_classifier_forward.2']
  #allocation7 [shape = 'u32[2048]{0}', space=vmem, size = 0x2000, scoped, tag = 'scoped memory for internal_classifier_forward.2']
  #allocation8 [shape = 'u32[2048]{0}', space=vmem, size = 0x2000, scoped, tag = 'scoped memory for internal_classifier_forward.2']
  #allocation9 [shape = 'u32[2048]{0}', space=vmem, size = 0x2000, scoped, tag = 'scoped memory for internal_classifier_forward.2']
  #allocation10 [shape = 'u32[2048]{0}', space=vmem, size = 0x2000, scoped, tag = 'scoped memory for internal_classifier_forward.2']
  #allocation11 [shape = 'u32[2048]{0}', space=vmem, size = 0x2000, scoped, tag = 'scoped memory for internal_classifier_forward.2']
  #allocation12 [shape = 'u32[2048]{0}', space=vmem, size = 0x2000, scoped, tag = 'scoped memory for internal_classifier_forward.2']
  #allocation13 [shape = 'u32[2048]{0}', space=vmem, size = 0x2000, scoped, tag = 'scoped memory for internal_classifier_forward.2']
  #allocation14 [shape = 'u32[2048]{0}', space=vmem, size = 0x2000, scoped, tag = 'scoped memory for internal_classifier_forward.2']
  #allocation15 [shape = 'u32[2048]{0}', space=vmem, size = 0x2000, scoped, tag = 'scoped memory for internal_classifier_forward.2']
  #allocation16 [shape = 'u32[2048]{0}', space=vmem, size = 0x2000, scoped, tag = 'scoped memory for internal_classifier_forward.2']
  %s0 = inlined_call_operand.vmem [shape: f32[4,217,128], index: 0, kind: input, shape index: {}]
  %s1 = inlined_call_operand.vmem [shape: f32[4,1,128], index: 1, kind: input, shape index: {}]
  %s2 = inlined_call_operand.vmem [shape: f32[4,512,128], index: 2, kind: input, shape index: {}]
  %s3 = inlined_call_operand.vmem [shape: f32[4,1,128], index: 3, kind: input, shape index: {}]
  %s4 = inlined_call_operand.vmem [shape: f32[4,32,72], index: 4, kind: input, shape index: {}]
  %s5 = inlined_call_operand.<no memory space> [shape: f32[], index: 5, kind: input, shape index: {}]
  %s6 = inlined_call_operand.vmem [shape: f32[4,32,72], index: 6, kind: input, shape index: {}]
  %s7 = inlined_call_operand.vmem [shape: f32[4,32,72], index: 7, kind: input, shape index: {}]
  %s8 = inlined_call_operand.vmem [shape: f32[217], index: 8, kind: input, shape index: {}]
  %s9 = inlined_call_operand.hbm [shape: f32[4,2,128], index: 9, kind: output, shape index: {}]
  %s10 = sld [smem:[#allocation0]]
  $region65: #{internal_classifier_forward.2} parent=0
    _
  %s12 = ssub.s32 1, %s10
  %s13 = scalar_select 0, %s12, %s10
  %v14 = vstv %s5
  %v15 = vstv %s5
  %v16 = vstv %s5
  $region1: #{internal_classifier_forward.2} parent=0
    #allocation17 [shape = 'u8[2048]{0}', space=vmem, size = 0x800, scoped, tag = 'output window, operand 0']
    #allocation18 [shape = 's32[2]{0}', space=sflag, size = 0x8, scoped, tag = 'scoped memory for internal_classifier_forward.2']
    %17 = vsyncpa [#allocation18], 0
    %s18 = scalar_lea.sflag [#allocation18], 1
    %19 = vsyncpa %s18, 0
    loop: start=0, step=1, limit=6
    $region2: #{internal_classifier_forward.2} parent=1 // loop_pre_header
      _
    $region3: #{internal_classifier_forward.2} parent=1 // loop_header
      %s21 = sphi 0, %s25
      %p22 = scmp.ge.s32.totalorder %s21, 6
      %s35 = sphi 0, %s37
      %s38 = sphi 0, %s35
      %s39 = sphi 0, %s38
      %s55 = sphi 0, %s39
      %s65 = sphi 0, %s67
      %s68 = sphi 0, %s65
      %s69 = sphi 0, %s68
      %s85 = sphi 0, %s69
      %s91 = sphi 0, %s93
      %s94 = sphi 0, %s91
      %s95 = sphi 0, %s94
      %s111 = sphi 0, %s95
      %s115 = sphi 0, %s115
      %s117 = sphi 0, %s115
      %s118 = sphi 0, %s117
      %s132 = sphi 0, %s118
      %s138 = sphi 0, %s140
      %s141 = sphi 0, %s138
      %s142 = sphi 0, %s141
      %s158 = sphi 0, %s142
      %s164 = sphi 0, %s166
      %s167 = sphi 0, %s164
      %s168 = sphi 0, %s167
      %s184 = sphi 0, %s168
      %s190 = sphi 0, %s192
      %s193 = sphi 0, %s190
      %s194 = sphi 0, %s193
      %s210 = sphi 0, %s194
      %s216 = sphi 0, %s218
      %s219 = sphi 0, %s216
      %s220 = sphi 0, %s219
      %s236 = sphi 0, %s220
      %s242 = sphi 0, %s244
      %s245 = sphi 0, %s242
      %s246 = sphi 0, %s245
      %s262 = sphi 0, %s246
    $region4: #{internal_classifier_forward.2} parent=1 // loop_header_branch
      %24 = sbr.rel (%p22) target = $region8
    $region5: #{internal_classifier_forward.2} parent=1 // loop_body
      %s26 = ssub.s32 %s21, 1
      %s27 = ssub.s32 %s21, 2
      %s28 = sadd.s32 %s21, 1
      %s31 = ssub.s32 %s21, %s28
      %s32 = ssub.s32 0, 0
      %s33 = sor.u32 %s31, %s32
      %p34 = scmp.eq.s32.totalorder %s33, 0
      %s36 = sadd.s32 %s35, 1
      %s37 = scalar_select %p34, %s35, %s36
      %p40 = pneg %p34
      %p41 = scmp.eq.s32.totalorder %s21, 3
      %p42 = por %p40, %p41
      %p43 = scmp.ne.s32.totalorder %s35, %s38
      %p44 = scmp.eq.s32.totalorder %s21, 0
      %p45 = por %p43, %p44
      %p46 = scmp.ne.s32.totalorder %s35, %s38
      %p47 = scmp.eq.s32.totalorder %s26, 3
      %p48 = por %p46, %p47
      %p49 = scmp.ne.s32.totalorder %s38, %s39
      %p50 = scmp.eq.s32.totalorder %s26, 0
      %p51 = por %p49, %p50
      %p52 = scmp.ne.s32.totalorder %s38, %s39
      %p53 = scmp.eq.s32.totalorder %s27, 3
      %p54 = por %p52, %p53
      %p56 = scmp.ne.s32.totalorder %s39, %s55
      %p57 = scmp.eq.s32.totalorder %s27, 0
      %p58 = por %p56, %p57
      %s61 = ssub.s32 %s21, %s28
      %s62 = ssub.s32 0, 0
      %s63 = sor.u32 %s61, %s62
      %p64 = scmp.eq.s32.totalorder %s63, 0
      %s66 = sadd.s32 %s65, 1
      %s67 = scalar_select %p64, %s65, %s66
      %p70 = pneg %p64
      %p71 = scmp.eq.s32.totalorder %s21, 3
      %p72 = por %p70, %p71
      %p73 = scmp.ne.s32.totalorder %s65, %s68
      %p74 = scmp.eq.s32.totalorder %s21, 0
      %p75 = por %p73, %p74
      %p76 = scmp.ne.s32.totalorder %s65, %s68
      %p77 = scmp.eq.s32.totalorder %s26, 3
      %p78 = por %p76, %p77
      %p79 = scmp.ne.s32.totalorder %s68, %s69
      %p80 = scmp.eq.s32.totalorder %s26, 0
      %p81 = por %p79, %p80
      %p82 = scmp.ne.s32.totalorder %s68, %s69
      %p83 = scmp.eq.s32.totalorder %s27, 3
      %p84 = por %p82, %p83
      %p86 = scmp.ne.s32.totalorder %s69, %s85
      %p87 = scmp.eq.s32.totalorder %s27, 0
      %p88 = por %p86, %p87
      %s89 = ssub.s32 %s21, %s28
      %p90 = scmp.eq.s32.totalorder %s89, 0
      %s92 = sadd.s32 %s91, 1
      %s93 = scalar_select %p90, %s91, %s92
      %p96 = pneg %p90
      %p97 = scmp.eq.s32.totalorder %s21, 3
      %p98 = por %p96, %p97
      %p99 = scmp.ne.s32.totalorder %s91, %s94
      %p100 = scmp.eq.s32.totalorder %s21, 0
      %p101 = por %p99, %p100
      %p102 = scmp.ne.s32.totalorder %s91, %s94
      %p103 = scmp.eq.s32.totalorder %s26, 3
      %p104 = por %p102, %p103
      %p105 = scmp.ne.s32.totalorder %s94, %s95
      %p106 = scmp.eq.s32.totalorder %s26, 0
      %p107 = por %p105, %p106
      %p108 = scmp.ne.s32.totalorder %s94, %s95
      %p109 = scmp.eq.s32.totalorder %s27, 3
      %p110 = por %p108, %p109
      %p112 = scmp.ne.s32.totalorder %s95, %s111
      %p113 = scmp.eq.s32.totalorder %s27, 0
      %p114 = por %p112, %p113
      %s116 = sadd.s32 %s115, 1
      %p119 = scmp.eq.s32.totalorder %s21, 3
      %p120 = scmp.ne.s32.totalorder %s115, %s117
      %p121 = scmp.eq.s32.totalorder %s21, 0
      %p122 = por %p120, %p121
      %p123 = scmp.ne.s32.totalorder %s115, %s117
      %p124 = scmp.eq.s32.totalorder %s26, 3
      %p125 = por %p123, %p124
      %p126 = scmp.ne.s32.totalorder %s117, %s118
      %p127 = scmp.eq.s32.totalorder %s26, 0
      %p128 = por %p126, %p127
      %p129 = scmp.ne.s32.totalorder %s117, %s118
      %p130 = scmp.eq.s32.totalorder %s27, 3
      %p131 = por %p129, %p130
      %p133 = scmp.ne.s32.totalorder %s118, %s132
      %p134 = scmp.eq.s32.totalorder %s27, 0
      %p135 = por %p133, %p134
      %s136 = ssub.s32 %s21, %s28
      %p137 = scmp.eq.s32.totalorder %s136, 0
      %s139 = sadd.s32 %s138, 1
      %s140 = scalar_select %p137, %s138, %s139
      %p143 = pneg %p137
      %p144 = scmp.eq.s32.totalorder %s21, 3
      %p145 = por %p143, %p144
      %p146 = scmp.ne.s32.totalorder %s138, %s141
      %p147 = scmp.eq.s32.totalorder %s21, 0
      %p148 = por %p146, %p147
      %p149 = scmp.ne.s32.totalorder %s138, %s141
      %p150 = scmp.eq.s32.totalorder %s26, 3
      %p151 = por %p149, %p150
      %p152 = scmp.ne.s32.totalorder %s141, %s142
      %p153 = scmp.eq.s32.totalorder %s26, 0
      %p154 = por %p152, %p153
      %p155 = scmp.ne.s32.totalorder %s141, %s142
      %p156 = scmp.eq.s32.totalorder %s27, 3
      %p157 = por %p155, %p156
      %p159 = scmp.ne.s32.totalorder %s142, %s158
      %p160 = scmp.eq.s32.totalorder %s27, 0
      %p161 = por %p159, %p160
      %s162 = ssub.s32 %s21, %s28
      %p163 = scmp.eq.s32.totalorder %s162, 0
      %s165 = sadd.s32 %s164, 1
      %s166 = scalar_select %p163, %s164, %s165
      %p169 = pneg %p163
      %p170 = scmp.eq.s32.totalorder %s21, 3
      %p171 = por %p169, %p170
      %p172 = scmp.ne.s32.totalorder %s164, %s167
      %p173 = scmp.eq.s32.totalorder %s21, 0
      %p174 = por %p172, %p173
      %p175 = scmp.ne.s32.totalorder %s164, %s167
      %p176 = scmp.eq.s32.totalorder %s26, 3
      %p177 = por %p175, %p176
      %p178 = scmp.ne.s32.totalorder %s167, %s168
      %p179 = scmp.eq.s32.totalorder %s26, 0
      %p180 = por %p178, %p179
      %p181 = scmp.ne.s32.totalorder %s167, %s168
      %p182 = scmp.eq.s32.totalorder %s27, 3
      %p183 = por %p181, %p182
      %p185 = scmp.ne.s32.totalorder %s168, %s184
      %p186 = scmp.eq.s32.totalorder %s27, 0
      %p187 = por %p185, %p186
      %s188 = ssub.s32 %s21, %s28
      %p189 = scmp.eq.s32.totalorder %s188, 0
      %s191 = sadd.s32 %s190, 1
      %s192 = scalar_select %p189, %s190, %s191
      %p195 = pneg %p189
      %p196 = scmp.eq.s32.totalorder %s21, 3
      %p197 = por %p195, %p196
      %p198 = scmp.ne.s32.totalorder %s190, %s193
      %p199 = scmp.eq.s32.totalorder %s21, 0
      %p200 = por %p198, %p199
      %p201 = scmp.ne.s32.totalorder %s190, %s193
      %p202 = scmp.eq.s32.totalorder %s26, 3
      %p203 = por %p201, %p202
      %p204 = scmp.ne.s32.totalorder %s193, %s194
      %p205 = scmp.eq.s32.totalorder %s26, 0
      %p206 = por %p204, %p205
      %p207 = scmp.ne.s32.totalorder %s193, %s194
      %p208 = scmp.eq.s32.totalorder %s27, 3
      %p209 = por %p207, %p208
      %p211 = scmp.ne.s32.totalorder %s194, %s210
      %p212 = scmp.eq.s32.totalorder %s27, 0
      %p213 = por %p211, %p212
      %s214 = ssub.s32 %s21, %s28
      %p215 = scmp.eq.s32.totalorder %s214, 0
      %s217 = sadd.s32 %s216, 1
      %s218 = scalar_select %p215, %s216, %s217
      %p221 = pneg %p215
      %p222 = scmp.eq.s32.totalorder %s21, 3
      %p223 = por %p221, %p222
      %p224 = scmp.ne.s32.totalorder %s216, %s219
      %p225 = scmp.eq.s32.totalorder %s21, 0
      %p226 = por %p224, %p225
      %p227 = scmp.ne.s32.totalorder %s216, %s219
      %p228 = scmp.eq.s32.totalorder %s26, 3
      %p229 = por %p227, %p228
      %p230 = scmp.ne.s32.totalorder %s219, %s220
      %p231 = scmp.eq.s32.totalorder %s26, 0
      %p232 = por %p230, %p231
      %p233 = scmp.ne.s32.totalorder %s219, %s220
      %p234 = scmp.eq.s32.totalorder %s27, 3
      %p235 = por %p233, %p234
      %p237 = scmp.ne.s32.totalorder %s220, %s236
      %p238 = scmp.eq.s32.totalorder %s27, 0
      %p239 = por %p237, %p238
      %s240 = ssub.s32 %s21, %s28
      %p241 = scmp.eq.s32.totalorder %s240, 0
      %s243 = sadd.s32 %s242, 1
      %s244 = scalar_select %p241, %s242, %s243
      %p247 = pneg %p241
      %p248 = scmp.eq.s32.totalorder %s21, 3
      %p249 = por %p247, %p248
      %p250 = scmp.ne.s32.totalorder %s242, %s245
      %p251 = scmp.eq.s32.totalorder %s21, 0
      %p252 = por %p250, %p251
      %p253 = scmp.ne.s32.totalorder %s242, %s245
      %p254 = scmp.eq.s32.totalorder %s26, 3
      %p255 = por %p253, %p254
      %p256 = scmp.ne.s32.totalorder %s245, %s246
      %p257 = scmp.eq.s32.totalorder %s26, 0
      %p258 = por %p256, %p257
      %p259 = scmp.ne.s32.totalorder %s245, %s246
      %p260 = scmp.eq.s32.totalorder %s27, 3
      %p261 = por %p259, %p260
      %p263 = scmp.ne.s32.totalorder %s246, %s262
      %p264 = scmp.eq.s32.totalorder %s27, 0
      %p265 = por %p263, %p264
      %p266 = scmp.le.s32.totalorder 1, %s21
      %p267 = scmp.lt.s32.totalorder %s21, 5
      %p268 = pnand %p266, %p267
      %p269 = pneg %p268
      // Predicated region
      $region9: #{internal_classifier_forward.2} parent=5 // pred_check
        _
      $region10: #{internal_classifier_forward.2} parent=5 // pred_check_branch
        %271 = sbr.rel (%p268) target = $region12
      $region11: #{internal_classifier_forward.2} parent=5 // pred_region
        %s272 = ssub.s32 %s21, 1
      $region12: #{internal_classifier_forward.2} parent=5 // pred_fallthru
        _
      %p273 = scmp.lt.s32.totalorder %s21, 4
      // Predicated region
      $region13: #{internal_classifier_forward.2} parent=5 // pred_check
        %p274 = pneg %p273
      $region14: #{internal_classifier_forward.2} parent=5 // pred_check_branch
        %276 = sbr.rel (%p274) target = $region16
      $region15: #{internal_classifier_forward.2} parent=5 // pred_region
        // Predicated region
        $region17: #{internal_classifier_forward.2} parent=15 // pred_check
          %p277 = pneg %p45
        $region18: #{internal_classifier_forward.2} parent=15 // pred_check_branch
          %279 = sbr.rel (%p277) target = $region20
        $region19: #{internal_classifier_forward.2} parent=15 // pred_region
          %s281 = ssub.s32 1, 0
          %s282 = smul.u32 512, %s281
          %p283 = scmp.lt.s32.totalorder %s21, 3
          %s284 = scalar_select %p283, %s21, 3
          %p285 = scmp.lt.s32.totalorder 0, 0
          %s286 = scalar_select %p285, 0, 0
          %s287 = smul.addr %s284, 4
          %s288 = sadd.s32 %s286, %s287
          %s289 = smul.addr %s288, 8
          %s290 = scalar_lea.vmem %s4, %s289
          %s292 = ssub.s32 1, 0
          %s293 = smul.u32 512, %s292
        $region20: #{internal_classifier_forward.2} parent=15 // pred_fallthru
          _
        // Predicated region
        $region21: #{internal_classifier_forward.2} parent=15 // pred_check
          %p294 = pneg %p75
        $region22: #{internal_classifier_forward.2} parent=15 // pred_check_branch
          %296 = sbr.rel (%p294) target = $region24
        $region23: #{internal_classifier_forward.2} parent=15 // pred_region
          %s298 = ssub.s32 1, 0
          %s299 = smul.u32 512, %s298
          %p300 = scmp.lt.s32.totalorder %s21, 3
          %s301 = scalar_select %p300, %s21, 3
          %p302 = scmp.lt.s32.totalorder 0, 0
          %s303 = scalar_select %p302, 0, 0
          %s304 = smul.addr %s301, 4
          %s305 = sadd.s32 %s303, %s304
          %s306 = smul.addr %s305, 8
          %s307 = scalar_lea.vmem %s6, %s306
          %s309 = ssub.s32 1, 0
          %s310 = smul.u32 512, %s309
        $region24: #{internal_classifier_forward.2} parent=15 // pred_fallthru
          _
        // Predicated region
        $region25: #{internal_classifier_forward.2} parent=15 // pred_check
          %p311 = pneg %p101
        $region26: #{internal_classifier_forward.2} parent=15 // pred_check_branch
          %313 = sbr.rel (%p311) target = $region28
        $region27: #{internal_classifier_forward.2} parent=15 // pred_region
          %p314 = scmp.lt.s32.totalorder %s21, 3
          %s315 = scalar_select %p314, %s21, 3
          %s316 = smul.addr %s315, 4
          %s317 = smul.addr %s316, 8
          %s318 = scalar_lea.vmem %s7, %s317
        $region28: #{internal_classifier_forward.2} parent=15 // pred_fallthru
          _
        // Predicated region
        $region29: #{internal_classifier_forward.2} parent=15 // pred_check
          %p319 = pneg %p122
        $region30: #{internal_classifier_forward.2} parent=15 // pred_check_branch
          %321 = sbr.rel (%p319) target = $region32
        $region31: #{internal_classifier_forward.2} parent=15 // pred_region
          _
        $region32: #{internal_classifier_forward.2} parent=15 // pred_fallthru
          _
        // Predicated region
        $region33: #{internal_classifier_forward.2} parent=15 // pred_check
          %p322 = pneg %p148
        $region34: #{internal_classifier_forward.2} parent=15 // pred_check_branch
          %324 = sbr.rel (%p322) target = $region36
        $region35: #{internal_classifier_forward.2} parent=15 // pred_region
          %p325 = scmp.lt.s32.totalorder %s21, 3
          %s326 = scalar_select %p325, %s21, 3
          %s327 = smul.addr %s326, 28
          %s328 = smul.addr %s327, 8
          %s329 = scalar_lea.vmem %s0, %s328
        $region36: #{internal_classifier_forward.2} parent=15 // pred_fallthru
          _
        // Predicated region
        $region37: #{internal_classifier_forward.2} parent=15 // pred_check
          %p330 = pneg %p174
        $region38: #{internal_classifier_forward.2} parent=15 // pred_check_branch
          %332 = sbr.rel (%p330) target = $region40
        $region39: #{internal_classifier_forward.2} parent=15 // pred_region
          %p333 = scmp.lt.s32.totalorder %s21, 3
          %s334 = scalar_select %p333, %s21, 3
          %s335 = scalar_lea.vmem %s1, %s334
        $region40: #{internal_classifier_forward.2} parent=15 // pred_fallthru
          _
        // Predicated region
        $region41: #{internal_classifier_forward.2} parent=15 // pred_check
          %p336 = pneg %p200
        $region42: #{internal_classifier_forward.2} parent=15 // pred_check_branch
          %338 = sbr.rel (%p336) target = $region44
        $region43: #{internal_classifier_forward.2} parent=15 // pred_region
          %p339 = scmp.lt.s32.totalorder %s21, 3
          %s340 = scalar_select %p339, %s21, 3
          %s341 = smul.addr %s340, 64
          %s342 = smul.addr %s341, 8
          %s343 = scalar_lea.vmem %s2, %s342
        $region44: #{internal_classifier_forward.2} parent=15 // pred_fallthru
          _
        // Predicated region
        $region45: #{internal_classifier_forward.2} parent=15 // pred_check
          %p344 = pneg %p226
        $region46: #{internal_classifier_forward.2} parent=15 // pred_check_branch
          %346 = sbr.rel (%p344) target = $region48
        $region47: #{internal_classifier_forward.2} parent=15 // pred_region
          %p347 = scmp.lt.s32.totalorder %s21, 3
          %s348 = scalar_select %p347, %s21, 3
          %s349 = scalar_lea.vmem %s3, %s348
        $region48: #{internal_classifier_forward.2} parent=15 // pred_fallthru
          _
      $region16: #{internal_classifier_forward.2} parent=5 // pred_fallthru
        _
      %p350 = scmp.le.s32.totalorder 1, %s21
      %p351 = scmp.lt.s32.totalorder %s21, 5
      %p352 = pnand %p350, %p351
      %p353 = pneg %p352
      // Predicated region
      $region49: #{internal_classifier_forward.2} parent=5 // pred_check
        _
      $region50: #{internal_classifier_forward.2} parent=5 // pred_check_branch
        %355 = sbr.rel (%p352) target = $region52
      $region51: #{internal_classifier_forward.2} parent=5 // pred_region
        #allocation19 [shape = 'u8[32768]{0}', space=vmem, size = 0x8000, dematerialized = true, scoped, tag = 'FusionAdapter Buffer %fusion.1 = f32[4,32,217]{2,1,0:T(8,128)} fusion(%param_4.6, %param_5.3, %param_6.3, %param_7.3, %param_8.3), kind=kLoop, calls=%fused_computation.4.clone, metadata={op_name="jit(internal_classifier_forward)/concatenate" stack_frame_id=13}']
        %s356 = ssub.s32 %s21, 1
        %s358 = ssub.s32 1, 0
        %s359 = smul.u32 512, %s358
        %p360 = scmp.lt.s32.totalorder %s26, 3
        %s361 = scalar_select %p360, %s26, 3
        %p362 = scmp.lt.s32.totalorder 0, 0
        %s363 = scalar_select %p362, 0, 0
        %s364 = smul.addr %s361, 4
        %s365 = sadd.s32 %s363, %s364
        %s366 = smul.addr %s365, 8
        %s367 = scalar_lea.vmem %s4, %s366
        %p368 = pneg %p51
        %p369 = pneg %p48
        %s371 = ssub.s32 1, 0
        %s372 = smul.u32 512, %s371
        %p373 = scmp.lt.s32.totalorder %s26, 3
        %s374 = scalar_select %p373, %s26, 3
        %p375 = scmp.lt.s32.totalorder 0, 0
        %s376 = scalar_select %p375, 0, 0
        %s377 = smul.addr %s374, 4
        %s378 = sadd.s32 %s376, %s377
        %s379 = smul.addr %s378, 8
        %s380 = scalar_lea.vmem %s6, %s379
        %p381 = pneg %p81
        %p382 = pneg %p78
        %p383 = scmp.lt.s32.totalorder %s26, 3
        %s384 = scalar_select %p383, %s26, 3
        %s385 = smul.addr %s384, 4
        %s386 = smul.addr %s385, 8
        %s387 = scalar_lea.vmem %s7, %s386
        %p388 = pneg %p107
        %p389 = pneg %p104
        %p390 = pneg %p128
        %p391 = pneg %p125
        %p392 = scmp.lt.s32.totalorder %s26, 3
        %s393 = scalar_select %p392, %s26, 3
        %s394 = smul.addr %s393, 28
        %s395 = smul.addr %s394, 8
        %s396 = scalar_lea.vmem %s0, %s395
        %p397 = pneg %p154
        %p398 = pneg %p151
        %p399 = scmp.lt.s32.totalorder %s26, 3
        %s400 = scalar_select %p399, %s26, 3
        %s401 = scalar_lea.vmem %s1, %s400
        %p402 = pneg %p180
        %p403 = pneg %p177
        %p404 = scmp.lt.s32.totalorder %s26, 3
        %s405 = scalar_select %p404, %s26, 3
        %s406 = smul.addr %s405, 64
        %s407 = smul.addr %s406, 8
        %s408 = scalar_lea.vmem %s2, %s407
        %p409 = pneg %p206
        %p410 = pneg %p203
        %p411 = scmp.lt.s32.totalorder %s26, 3
        %s412 = scalar_select %p411, %s26, 3
        %s413 = scalar_lea.vmem %s3, %s412
        %p414 = pneg %p232
        %p415 = pneg %p229
        %p416 = pneg %p258
        %p417 = pneg %p255
        %s418 = sand.u32 %s245, 1
        %s419 = scalar_lea.sflag [#allocation18], %s418
        %s420 = sand.u32 %s245, 1
        %s421 = smul.addr %s420, 2
        %s422 = scalar_lea.vmem [#allocation17], %s421
        %s424 = ssub.s32 1, 0
        %s425 = smul.u32 512, %s424
        %p426 = scmp.lt.s32.totalorder %s26, 3
        %s427 = scalar_select %p426, %s26, 3
        %p428 = scmp.lt.s32.totalorder 0, 0
        %s429 = scalar_select %p428, 0, 0
        %s430 = smul.addr %s427, 4
        %s431 = sadd.s32 %s429, %s430
        %s432 = smul.addr %s431, 8
        %s433 = scalar_lea.vmem %s4, %s432
        %s435 = ssub.s32 1, 0
        %s436 = smul.u32 512, %s435
        %s438 = ssub.s32 1, 0
        %s439 = smul.u32 512, %s438
        %p440 = scmp.lt.s32.totalorder %s26, 3
        %s441 = scalar_select %p440, %s26, 3
        %p442 = scmp.lt.s32.totalorder 0, 0
        %s443 = scalar_select %p442, 0, 0
        %s444 = smul.addr %s441, 4
        %s445 = sadd.s32 %s443, %s444
        %s446 = smul.addr %s445, 8
        %s447 = scalar_lea.vmem %s6, %s446
        %s449 = ssub.s32 1, 0
        %s450 = smul.u32 512, %s449
        %p451 = scmp.lt.s32.totalorder %s26, 3
        %s452 = scalar_select %p451, %s26, 3
        %s453 = smul.addr %s452, 4
        %s454 = smul.addr %s453, 8
        %s455 = scalar_lea.vmem %s7, %s454
        %p456 = scmp.lt.s32.totalorder %s26, 3
        %s457 = scalar_select %p456, %s26, 3
        %s458 = smul.addr %s457, 28
        %s459 = smul.addr %s458, 8
        %s460 = scalar_lea.vmem %s0, %s459
        %p461 = scmp.lt.s32.totalorder %s26, 3
        %s462 = scalar_select %p461, %s26, 3
        %s463 = scalar_lea.vmem %s1, %s462
        %p464 = scmp.lt.s32.totalorder %s26, 3
        %s465 = scalar_select %p464, %s26, 3
        %s466 = smul.addr %s465, 64
        %s467 = smul.addr %s466, 8
        %s468 = scalar_lea.vmem %s2, %s467
        %p469 = scmp.lt.s32.totalorder %s26, 3
        %s470 = scalar_select %p469, %s26, 3
        %s471 = scalar_lea.vmem %s3, %s470
        %s472 = ssub.s32 0, 0
        %p473 = scmp.lt.s32.totalorder %s472, 0
        %s474 = scalar_select %p473, 0, 255
        %v475 = vld [vmem:[%s433] sm:%s474]
        %s476 = ssub.s32 0, 0
        %p477 = scmp.lt.s32.totalorder %s476, 0
        %s478 = scalar_select %p477, 0, 255
        %v479 = vld [vmem:[%s447] sm:%s478]
        %v480 = vlaneseq
        %v481 = vand.u32 %v480, 127
        %v482 = vadd.s32 %v481, 128
        %vm483 = vcmp.lt.s32.totalorder %v482, 200
        %v484 = vsel %vm483, %v479, %v15
        %v485 = vlaneseq
        %v486 = vand.u32 %v485, 127
        %vm487 = vcmp.lt.s32.totalorder %v486, 56
        %v488 = vsel %vm487, %v484, %v15
        %489 = vrot.lane.b32.xlu0 %v488, 72
        %v490 = vpop.permute.xlu0 %489
        %v491 = vld [vmem:[%s455] sm:$0xff]
        %v492 = vlaneseq
        %v493 = vand.u32 %v492, 127
        %vm495 = vcmp.lt.s32.totalorder %v493, 72
        %v496 = vsel %vm495, %v491, %v16
        %v497 = vld [vmem:[%s8] ss:$0 sm:$0xff]
        %498 = xla_tuple %v496, %v490
        %499 = xla_tuple %498
        %v500 = vmax.f32 %v496, %v490
        %501 = xla_tuple %v500
        %502 = xla_tuple %v500, %v14
        %503 = xla_tuple %502
        %v504 = vmax.f32 %v500, %v14
        %505 = xla_tuple %v504
        %506 = xla_tuple %v504, %v497
        %507 = xla_tuple %506
        %v508 = vmax.f32 %v504, %v497
        %509 = xla_tuple %v508
        %511 = vst [vmem:[#allocation19] sm:$0xff] %v508
        %v512 = vlaneseq
        %v513 = vand.u32 %v512, 127
        %v514 = vadd.s32 %v513, 256
        %vm515 = vcmp.lt.s32.totalorder %v514, 328
        %v516 = vsel %vm515, %v475, %v14
        %v517 = vlaneseq
        %v518 = vand.u32 %v517, 127
        %vm519 = vcmp.lt.s32.totalorder %v518, 112
        %v520 = vsel %vm519, %v516, %v14
        %521 = vrot.lane.b32.xlu0 %v520, 16
        %v522 = vpop.permute.xlu0 %521
        %v523 = vlaneseq
        %v524 = vand.u32 %v523, 127
        %vm525 = vcmp.lt.s32.totalorder %v524, 56
        %v526 = vsel %vm525, %v15, %v484
        %527 = vrot.lane.b32.xlu0 %v526, 72
        %v528 = vpop.permute.xlu0 %527
        %s529 = scalar_lea.vmem %s8, 1
        %v530 = vld [vmem:[%s529] ss:$0 sm:$0xff]
        %531 = xla_tuple %v16, %v528
        %532 = xla_tuple %531
        %v533 = vmax.f32 %v16, %v528
        %534 = xla_tuple %v533
        %535 = xla_tuple %v533, %v522
        %536 = xla_tuple %535
        %v537 = vmax.f32 %v533, %v522
        %538 = xla_tuple %v537
        %539 = xla_tuple %v537, %v530
        %540 = xla_tuple %539
        %v541 = vmax.f32 %v537, %v530
        %542 = xla_tuple %v541
        %s543 = scalar_lea.vmem [#allocation19], 8
        %545 = vst [vmem:[%s543] sm:$0xff] %v541
        %s546 = scalar_lea.vmem %s433, 8
        %s547 = ssub.s32 0, 0
        %p548 = scmp.lt.s32.totalorder %s547, 0
        %s549 = scalar_select %p548, 0, 255
        %v550 = vld [vmem:[%s546] sm:%s549]
        %s551 = scalar_lea.vmem %s433, 8
        %s552 = scalar_lea.vmem %s447, 8
        %s553 = ssub.s32 0, 0
        %p554 = scmp.lt.s32.totalorder %s553, 0
        %s555 = scalar_select %p554, 0, 255
        %v556 = vld [vmem:[%s552] sm:%s555]
        %s557 = scalar_lea.vmem %s447, 8
        %v558 = vlaneseq
        %v559 = vand.u32 %v558, 127
        %v560 = vadd.s32 %v559, 128
        %vm561 = vcmp.lt.s32.totalorder %v560, 200
        %v562 = vsel %vm561, %v556, %v15
        %v563 = vlaneseq
        %v564 = vand.u32 %v563, 127
        %vm565 = vcmp.lt.s32.totalorder %v564, 56
        %v566 = vsel %vm565, %v562, %v15
        %567 = vrot.lane.b32.xlu0 %v566, 72
        %v568 = vpop.permute.xlu0 %567
        %s569 = scalar_lea.vmem %s455, 8
        %v570 = vld [vmem:[%s569] sm:$0xff]
        %v571 = vlaneseq
        %v572 = vand.u32 %v571, 127
        %vm574 = vcmp.lt.s32.totalorder %v572, 72
        %v575 = vsel %vm574, %v570, %v16
        %576 = xla_tuple %v575, %v568
        %577 = xla_tuple %576
        %v578 = vmax.f32 %v575, %v568
        %579 = xla_tuple %v578
        %580 = xla_tuple %v578, %v14
        %581 = xla_tuple %580
        %v582 = vmax.f32 %v578, %v14
        %583 = xla_tuple %v582
        %584 = xla_tuple %v582, %v497
        %585 = xla_tuple %584
        %v586 = vmax.f32 %v582, %v497
        %587 = xla_tuple %v586
        %s588 = scalar_lea.vmem [#allocation19], 16
        %590 = vst [vmem:[%s588] sm:$0xff] %v586
        %s591 = scalar_lea.vmem %s433, 8
        %v592 = vlaneseq
        %v593 = vand.u32 %v592, 127
        %v594 = vadd.s32 %v593, 256
        %vm595 = vcmp.lt.s32.totalorder %v594, 328
        %v596 = vsel %vm595, %v550, %v14
        %v597 = vlaneseq
        %v598 = vand.u32 %v597, 127
        %vm599 = vcmp.lt.s32.totalorder %v598, 112
        %v600 = vsel %vm599, %v596, %v14
        %601 = vrot.lane.b32.xlu0 %v600, 16
        %v602 = vpop.permute.xlu0 %601
        %s603 = scalar_lea.vmem %s447, 8
        %v604 = vlaneseq
        %v605 = vand.u32 %v604, 127
        %vm606 = vcmp.lt.s32.totalorder %v605, 56
        %v607 = vsel %vm606, %v15, %v562
        %608 = vrot.lane.b32.xlu0 %v607, 72
        %v609 = vpop.permute.xlu0 %608
        %610 = xla_tuple %v16, %v609
        %611 = xla_tuple %610
        %v612 = vmax.f32 %v16, %v609
        %613 = xla_tuple %v612
        %614 = xla_tuple %v612, %v602
        %615 = xla_tuple %614
        %v616 = vmax.f32 %v612, %v602
        %617 = xla_tuple %v616
        %618 = xla_tuple %v616, %v530
        %619 = xla_tuple %618
        %v620 = vmax.f32 %v616, %v530
        %621 = xla_tuple %v620
        %s622 = scalar_lea.vmem [#allocation19], 24
        %624 = vst [vmem:[%s622] sm:$0xff] %v620
        %s625 = scalar_lea.vmem %s433, 16
        %s626 = ssub.s32 0, 0
        %p627 = scmp.lt.s32.totalorder %s626, 0
        %s628 = scalar_select %p627, 0, 255
        %v629 = vld [vmem:[%s625] sm:%s628]
        %s630 = scalar_lea.vmem %s433, 16
        %s631 = scalar_lea.vmem %s447, 16
        %s632 = ssub.s32 0, 0
        %p633 = scmp.lt.s32.totalorder %s632, 0
        %s634 = scalar_select %p633, 0, 255
        %v635 = vld [vmem:[%s631] sm:%s634]
        %s636 = scalar_lea.vmem %s447, 16
        %v637 = vlaneseq
        %v638 = vand.u32 %v637, 127
        %v639 = vadd.s32 %v638, 128
        %vm640 = vcmp.lt.s32.totalorder %v639, 200
        %v641 = vsel %vm640, %v635, %v15
        %v642 = vlaneseq
        %v643 = vand.u32 %v642, 127
        %vm644 = vcmp.lt.s32.totalorder %v643, 56
        %v645 = vsel %vm644, %v641, %v15
        %646 = vrot.lane.b32.xlu0 %v645, 72
        %v647 = vpop.permute.xlu0 %646
        %s648 = scalar_lea.vmem %s455, 16
        %v649 = vld [vmem:[%s648] sm:$0xff]
        %v650 = vlaneseq
        %v651 = vand.u32 %v650, 127
        %vm653 = vcmp.lt.s32.totalorder %v651, 72
        %v654 = vsel %vm653, %v649, %v16
        %655 = xla_tuple %v654, %v647
        %656 = xla_tuple %655
        %v657 = vmax.f32 %v654, %v647
        %658 = xla_tuple %v657
        %659 = xla_tuple %v657, %v14
        %660 = xla_tuple %659
        %v661 = vmax.f32 %v657, %v14
        %662 = xla_tuple %v661
        %663 = xla_tuple %v661, %v497
        %664 = xla_tuple %663
        %v665 = vmax.f32 %v661, %v497
        %666 = xla_tuple %v665
        %s667 = scalar_lea.vmem [#allocation19], 32
        %669 = vst [vmem:[%s667] sm:$0xff] %v665
        %s670 = scalar_lea.vmem %s433, 16
        %v671 = vlaneseq
        %v672 = vand.u32 %v671, 127
        %v673 = vadd.s32 %v672, 256
        %vm674 = vcmp.lt.s32.totalorder %v673, 328
        %v675 = vsel %vm674, %v629, %v14
        %v676 = vlaneseq
        %v677 = vand.u32 %v676, 127
        %vm678 = vcmp.lt.s32.totalorder %v677, 112
        %v679 = vsel %vm678, %v675, %v14
        %680 = vrot.lane.b32.xlu0 %v679, 16
        %v681 = vpop.permute.xlu0 %680
        %s682 = scalar_lea.vmem %s447, 16
        %v683 = vlaneseq
        %v684 = vand.u32 %v683, 127
        %vm685 = vcmp.lt.s32.totalorder %v684, 56
        %v686 = vsel %vm685, %v15, %v641
        %687 = vrot.lane.b32.xlu0 %v686, 72
        %v688 = vpop.permute.xlu0 %687
        %689 = xla_tuple %v16, %v688
        %690 = xla_tuple %689
        %v691 = vmax.f32 %v16, %v688
        %692 = xla_tuple %v691
        %693 = xla_tuple %v691, %v681
        %694 = xla_tuple %693
        %v695 = vmax.f32 %v691, %v681
        %696 = xla_tuple %v695
        %697 = xla_tuple %v695, %v530
        %698 = xla_tuple %697
        %v699 = vmax.f32 %v695, %v530
        %700 = xla_tuple %v699
        %s701 = scalar_lea.vmem [#allocation19], 40
        %703 = vst [vmem:[%s701] sm:$0xff] %v699
        %s704 = scalar_lea.vmem %s433, 24
        %s705 = ssub.s32 0, 0
        %p706 = scmp.lt.s32.totalorder %s705, 0
        %s707 = scalar_select %p706, 0, 255
        %v708 = vld [vmem:[%s704] sm:%s707]
        %s709 = scalar_lea.vmem %s433, 24
        %s710 = scalar_lea.vmem %s447, 24
        %s711 = ssub.s32 0, 0
        %p712 = scmp.lt.s32.totalorder %s711, 0
        %s713 = scalar_select %p712, 0, 255
        %v714 = vld [vmem:[%s710] sm:%s713]
        %s715 = scalar_lea.vmem %s447, 24
        %v716 = vlaneseq
        %v717 = vand.u32 %v716, 127
        %v718 = vadd.s32 %v717, 128
        %vm719 = vcmp.lt.s32.totalorder %v718, 200
        %v720 = vsel %vm719, %v714, %v15
        %v721 = vlaneseq
        %v722 = vand.u32 %v721, 127
        %vm723 = vcmp.lt.s32.totalorder %v722, 56
        %v724 = vsel %vm723, %v720, %v15
        %725 = vrot.lane.b32.xlu0 %v724, 72
        %v726 = vpop.permute.xlu0 %725
        %s727 = scalar_lea.vmem %s455, 24
        %v728 = vld [vmem:[%s727] sm:$0xff]
        %v729 = vlaneseq
        %v730 = vand.u32 %v729, 127
        %vm732 = vcmp.lt.s32.totalorder %v730, 72
        %v733 = vsel %vm732, %v728, %v16
        %734 = xla_tuple %v733, %v726
        %735 = xla_tuple %734
        %v736 = vmax.f32 %v733, %v726
        %737 = xla_tuple %v736
        %738 = xla_tuple %v736, %v14
        %739 = xla_tuple %738
        %v740 = vmax.f32 %v736, %v14
        %741 = xla_tuple %v740
        %742 = xla_tuple %v740, %v497
        %743 = xla_tuple %742
        %v744 = vmax.f32 %v740, %v497
        %745 = xla_tuple %v744
        %s746 = scalar_lea.vmem [#allocation19], 48
        %748 = vst [vmem:[%s746] sm:$0xff] %v744
        %s749 = scalar_lea.vmem %s433, 24
        %v750 = vlaneseq
        %v751 = vand.u32 %v750, 127
        %v752 = vadd.s32 %v751, 256
        %vm753 = vcmp.lt.s32.totalorder %v752, 328
        %v754 = vsel %vm753, %v708, %v14
        %v755 = vlaneseq
        %v756 = vand.u32 %v755, 127
        %vm757 = vcmp.lt.s32.totalorder %v756, 112
        %v758 = vsel %vm757, %v754, %v14
        %759 = vrot.lane.b32.xlu0 %v758, 16
        %v760 = vpop.permute.xlu0 %759
        %s761 = scalar_lea.vmem %s447, 24
        %v762 = vlaneseq
        %v763 = vand.u32 %v762, 127
        %vm764 = vcmp.lt.s32.totalorder %v763, 56
        %v765 = vsel %vm764, %v15, %v720
        %766 = vrot.lane.b32.xlu0 %v765, 72
        %v767 = vpop.permute.xlu0 %766
        %768 = xla_tuple %v16, %v767
        %769 = xla_tuple %768
        %v770 = vmax.f32 %v16, %v767
        %771 = xla_tuple %v770
        %772 = xla_tuple %v770, %v760
        %773 = xla_tuple %772
        %v774 = vmax.f32 %v770, %v760
        %775 = xla_tuple %v774
        %776 = xla_tuple %v774, %v530
        %777 = xla_tuple %776
        %v778 = vmax.f32 %v774, %v530
        %779 = xla_tuple %v778
        %s780 = scalar_lea.vmem [#allocation19], 56
        %782 = vst [vmem:[%s780] sm:$0xff] %v778
        %v783 = vld [vmem:[#allocation19] sm:$0xff]
        %v784 = vld [vmem:[#allocation19 + $0x8] sm:$0xff]
        %v785 = vld [vmem:[#allocation19 + $0x10] sm:$0xff]
        %v786 = vld [vmem:[#allocation19 + $0x18] sm:$0xff]
        %v787 = vld [vmem:[#allocation19 + $0x20] sm:$0xff]
        %v788 = vld [vmem:[#allocation19 + $0x28] sm:$0xff]
        %v789 = vld [vmem:[#allocation19 + $0x30] sm:$0xff]
        %v790 = vld [vmem:[#allocation19 + $0x38] sm:$0xff]
        %v791 = vld [vmem:[%s460] sm:$0xff]
        %v792 = vld [vmem:[%s460 + $0x8] sm:$0xff]
        %v793 = vld [vmem:[%s460 + $0x10] sm:$0xff]
        %v794 = vld [vmem:[%s460 + $0x18] sm:$0xff]
        %v795 = vld [vmem:[%s460 + $0x20] sm:$0xff]
        %v796 = vld [vmem:[%s460 + $0x28] sm:$0xff]
        %v797 = vld [vmem:[%s460 + $0x30] sm:$0xff]
        %v798 = vld [vmem:[%s460 + $0x38] sm:$0xff]
        %v799 = vld [vmem:[%s460 + $0x40] sm:$0xff]
        %v800 = vld [vmem:[%s460 + $0x48] sm:$0xff]
        %v801 = vld [vmem:[%s460 + $0x50] sm:$0xff]
        %v802 = vld [vmem:[%s460 + $0x58] sm:$0xff]
        %v803 = vld [vmem:[%s460 + $0x60] sm:$0xff]
        %v804 = vld [vmem:[%s460 + $0x68] sm:$0xff]
        %v805 = vld [vmem:[%s460 + $0x70] sm:$0xff]
        %v806 = vld [vmem:[%s460 + $0x78] sm:$0xff]
        %v807 = vld [vmem:[%s460 + $0x80] sm:$0xff]
        %v808 = vld [vmem:[%s460 + $0x88] sm:$0xff]
        %v809 = vld [vmem:[%s460 + $0x90] sm:$0xff]
        %v810 = vld [vmem:[%s460 + $0x98] sm:$0xff]
        %v811 = vld [vmem:[%s460 + $0xa0] sm:$0xff]
        %v812 = vld [vmem:[%s460 + $0xa8] sm:$0xff]
        %v813 = vld [vmem:[%s460 + $0xb0] sm:$0xff]
        %v814 = vld [vmem:[%s460 + $0xb8] sm:$0xff]
        %v815 = vld [vmem:[%s460 + $0xc0] sm:$0xff]
        %v816 = vld [vmem:[%s460 + $0xc8] sm:$0xff]
        %v817 = vld [vmem:[%s460 + $0xd0] sm:$0xff]
        %v818 = vld [vmem:[%s460 + $0xd8] sm:$0x1]
        %vm819 = vcmask 728064
        %v821 = vsel %vm819, %v784, 0
        %v824 = vsel %vm819, %v786, 0
        %v827 = vsel %vm819, %v788, 0
        %v830 = vsel %vm819, %v790, 0
        %vm832 = vcmask 1040384
        %v834 = vsel %vm832, %v818, 0
        %836 = vmatprep.subr.mxu0 0.0
        %837 = vmatpush1.msra.mxu0 %v791
        %838 = vmatprep.subr.mxu0 0.0
        %839 = vmatpush1.msra.mxu0 %v792
        %840 = vmatprep.subr.mxu0 0.0
        %841 = vmatpush1.msra.mxu0 %v793
        %842 = vmatprep.subr.mxu0 0.0
        %843 = vmatpush1.msra.mxu0 %v794
        %844 = vmatprep.subr.mxu0 0.0
        %845 = vmatpush1.msra.mxu0 %v795
        %846 = vmatprep.subr.mxu0 0.0
        %847 = vmatpush1.msra.mxu0 %v796
        %848 = vmatprep.subr.mxu0 0.0
        %849 = vmatpush1.msra.mxu0 %v797
        %850 = vmatprep.subr.mxu0 0.0
        %851 = vmatpush1.msra.mxu0 %v798
        %852 = vmatprep.subr.mxu0 0.0
        %853 = vmatpush1.msra.mxu0 %v799
        %854 = vmatprep.subr.mxu0 0.0
        %855 = vmatpush1.msra.mxu0 %v800
        %856 = vmatprep.subr.mxu0 0.0
        %857 = vmatpush1.msra.mxu0 %v801
        %858 = vmatprep.subr.mxu0 0.0
        %859 = vmatpush1.msra.mxu0 %v802
        %860 = vmatprep.subr.mxu0 0.0
        %861 = vmatpush1.msra.mxu0 %v803
        %862 = vmatprep.subr.mxu0 0.0
        %863 = vmatpush1.msra.mxu0 %v804
        %864 = vmatprep.subr.mxu0 0.0
        %865 = vmatpush1.msra.mxu0 %v805
        %866 = vmatprep.subr.mxu0 0.0
        %867 = vmatpush1.msra.mxu0 %v806
        %868 = vmatprep.subr.mxu0 0.0
        %869 = vmatpush1.msra.mxu0 %v807
        %870 = vmatprep.subr.mxu0 0.0
        %871 = vmatpush1.msra.mxu0 %v808
        %872 = vmatprep.subr.mxu0 0.0
        %873 = vmatpush1.msra.mxu0 %v809
        %874 = vmatprep.subr.mxu0 0.0
        %875 = vmatpush1.msra.mxu0 %v810
        %876 = vmatprep.subr.mxu0 0.0
        %877 = vmatpush1.msra.mxu0 %v811
        %878 = vmatprep.subr.mxu0 0.0
        %879 = vmatpush1.msra.mxu0 %v812
        %880 = vmatprep.subr.mxu0 0.0
        %881 = vmatpush1.msra.mxu0 %v813
        %882 = vmatprep.subr.mxu0 0.0
        %883 = vmatpush1.msra.mxu0 %v814
        %884 = vmatprep.subr.mxu0 0.0
        %885 = vmatpush1.msra.mxu0 %v815
        %886 = vmatprep.subr.mxu0 0.0
        %887 = vmatpush1.msra.mxu0 %v816
        %888 = vmatprep.subr.mxu0 0.0
        %889 = vmatpush1.msra.mxu0 %v817
        %890 = vmatprep.subr.mxu0 0.0
        %891 = vmatpush1.msra.mxu0 %v834
        %892 = vmatprep.subr.mxu0 0.0
        %893 = vmatpush1.msra.mxu0 0.0
        %894 = vmatprep.subr.mxu0 0.0
        %895 = vmatpush1.msra.mxu0 0.0
        %896 = vmatprep.subr.mxu0 0.0
        %897 = vmatpush1.msra.mxu0 0.0
        %898 = vmatprep.subr.mxu0 0.0
        %899 = vmatpush1.msra.mxu0 0.0
        %900 = vmatprep.mubr.f32.mxu0 %v821
        %901 = vmatmul.mubr.f32.gmra.mrb[0].mxu0 %v783
        %v902 = vpop.f32.mrb[0].mxu0
        %v903 = vadd.f32 0.0, %v902
        %v904 = vpop.f32.mrb[0].mxu0
        %905 = vmatprep.mubr.f32.mxu0 %v824
        %906 = vmatmul.mubr.f32.gmra.mrb[0].mxu0 %v785
        %v907 = vpop.f32.mrb[0].mxu0
        %v908 = vadd.f32 0.0, %v907
        %v909 = vpop.f32.mrb[0].mxu0
        %910 = vmatprep.mubr.f32.mxu0 %v827
        %911 = vmatmul.mubr.f32.gmra.mrb[0].mxu0 %v787
        %v912 = vpop.f32.mrb[0].mxu0
        %v913 = vadd.f32 0.0, %v912
        %v914 = vpop.f32.mrb[0].mxu0
        %915 = vmatprep.mubr.f32.mxu0 %v830
        %916 = vmatmul.mubr.f32.gmra.mrb[0].mxu0 %v789
        %v917 = vpop.f32.mrb[0].mxu0
        %v918 = vadd.f32 0.0, %v917
        %v919 = vpop.f32.mrb[0].mxu0
        %920 = vdwg.mxu0
        %v921 = vmax.f32 %v903, 0.0
        %v922 = vmax.f32 %v908, 0.0
        %v923 = vmax.f32 %v913, 0.0
        %v924 = vmax.f32 %v918, 0.0
        %v929 = vcombine.high %v921, %v921
        %v930 = vcombine.high %v922, %v922
        %v931 = vcombine.high %v923, %v923
        %v932 = vcombine.high %v924, %v924
        %vm937 = vcmask 1043456
        %v938 = vsel %vm937, %v921, -inf
        %v939 = vrot.slane %v938, 4
        %v940 = vmax.f32 %v938, %v939
        %v941 = vrot.slane %v940, 2
        %v942 = vmax.f32 %v940, %v941
        %v943 = vrot.slane %v942, 1
        %v944 = vmax.f32 %v942, %v943
        %v945 = vsel %vm937, %v929, -inf
        %v946 = vrot.slane %v945, 4
        %v947 = vmax.f32 %v945, %v946
        %v948 = vrot.slane %v947, 2
        %v949 = vmax.f32 %v947, %v948
        %v950 = vrot.slane %v949, 1
        %v951 = vmax.f32 %v949, %v950
        %v952 = vsel %vm937, %v922, -inf
        %v953 = vrot.slane %v952, 4
        %v954 = vmax.f32 %v952, %v953
        %v955 = vrot.slane %v954, 2
        %v956 = vmax.f32 %v954, %v955
        %v957 = vrot.slane %v956, 1
        %v958 = vmax.f32 %v956, %v957
        %v959 = vsel %vm937, %v930, -inf
        %v960 = vrot.slane %v959, 4
        %v961 = vmax.f32 %v959, %v960
        %v962 = vrot.slane %v961, 2
        %v963 = vmax.f32 %v961, %v962
        %v964 = vrot.slane %v963, 1
        %v965 = vmax.f32 %v963, %v964
        %v966 = vsel %vm937, %v923, -inf
        %v967 = vrot.slane %v966, 4
        %v968 = vmax.f32 %v966, %v967
        %v969 = vrot.slane %v968, 2
        %v970 = vmax.f32 %v968, %v969
        %v971 = vrot.slane %v970, 1
        %v972 = vmax.f32 %v970, %v971
        %v973 = vsel %vm937, %v931, -inf
        %v974 = vrot.slane %v973, 4
        %v975 = vmax.f32 %v973, %v974
        %v976 = vrot.slane %v975, 2
        %v977 = vmax.f32 %v975, %v976
        %v978 = vrot.slane %v977, 1
        %v979 = vmax.f32 %v977, %v978
        %v980 = vsel %vm937, %v924, -inf
        %v981 = vrot.slane %v980, 4
        %v982 = vmax.f32 %v980, %v981
        %v983 = vrot.slane %v982, 2
        %v984 = vmax.f32 %v982, %v983
        %v985 = vrot.slane %v984, 1
        %v986 = vmax.f32 %v984, %v985
        %v987 = vsel %vm937, %v932, -inf
        %v988 = vrot.slane %v987, 4
        %v989 = vmax.f32 %v987, %v988
        %v990 = vrot.slane %v989, 2
        %v991 = vmax.f32 %v989, %v990
        %v992 = vrot.slane %v991, 1
        %v993 = vmax.f32 %v991, %v992
        %v994 = vsel %vm937, %v921, 0.0
        %v995 = vrot.slane %v994, 4
        %v996 = vadd.f32 %v994, %v995
        %v997 = vrot.slane %v996, 2
        %v998 = vadd.f32 %v996, %v997
        %v999 = vrot.slane %v998, 1
        %v1000 = vadd.f32 %v998, %v999
        %v1001 = vsel %vm937, %v929, 0.0
        %v1002 = vrot.slane %v1001, 4
        %v1003 = vadd.f32 %v1001, %v1002
        %v1004 = vrot.slane %v1003, 2
        %v1005 = vadd.f32 %v1003, %v1004
        %v1006 = vrot.slane %v1005, 1
        %v1007 = vadd.f32 %v1005, %v1006
        %v1008 = vsel %vm937, %v922, 0.0
        %v1009 = vrot.slane %v1008, 4
        %v1010 = vadd.f32 %v1008, %v1009
        %v1011 = vrot.slane %v1010, 2
        %v1012 = vadd.f32 %v1010, %v1011
        %v1013 = vrot.slane %v1012, 1
        %v1014 = vadd.f32 %v1012, %v1013
        %v1015 = vsel %vm937, %v930, 0.0
        %v1016 = vrot.slane %v1015, 4
        %v1017 = vadd.f32 %v1015, %v1016
        %v1018 = vrot.slane %v1017, 2
        %v1019 = vadd.f32 %v1017, %v1018
        %v1020 = vrot.slane %v1019, 1
        %v1021 = vadd.f32 %v1019, %v1020
        %v1022 = vsel %vm937, %v923, 0.0
        %v1023 = vrot.slane %v1022, 4
        %v1024 = vadd.f32 %v1022, %v1023
        %v1025 = vrot.slane %v1024, 2
        %v1026 = vadd.f32 %v1024, %v1025
        %v1027 = vrot.slane %v1026, 1
        %v1028 = vadd.f32 %v1026, %v1027
        %v1029 = vsel %vm937, %v931, 0.0
        %v1030 = vrot.slane %v1029, 4
        %v1031 = vadd.f32 %v1029, %v1030
        %v1032 = vrot.slane %v1031, 2
        %v1033 = vadd.f32 %v1031, %v1032
        %v1034 = vrot.slane %v1033, 1
        %v1035 = vadd.f32 %v1033, %v1034
        %v1036 = vsel %vm937, %v924, 0.0
        %v1037 = vrot.slane %v1036, 4
        %v1038 = vadd.f32 %v1036, %v1037
        %v1039 = vrot.slane %v1038, 2
        %v1040 = vadd.f32 %v1038, %v1039
        %v1041 = vrot.slane %v1040, 1
        %v1042 = vadd.f32 %v1040, %v1041
        %v1043 = vsel %vm937, %v932, 0.0
        %v1044 = vrot.slane %v1043, 4
        %v1045 = vadd.f32 %v1043, %v1044
        %v1046 = vrot.slane %v1045, 2
        %v1047 = vadd.f32 %v1045, %v1046
        %v1048 = vrot.slane %v1047, 1
        %v1049 = vadd.f32 %v1047, %v1048
        %vm1058 = vcmask 1041409
        %v1059 = vsel %vm1058, %v951, %v944
        %vm1060 = vcmask 1042434
        %v1061 = vsel %vm1060, %v958, %v1059
        %vm1062 = vcmask 1043459
        %v1063 = vsel %vm1062, %v965, %v1061
        %vm1064 = vcmask 1044484
        %v1065 = vsel %vm1064, %v972, %v1063
        %vm1066 = vcmask 1045509
        %v1067 = vsel %vm1066, %v979, %v1065
        %vm1068 = vcmask 1046534
        %v1069 = vsel %vm1068, %v986, %v1067
        %vm1070 = vcmask 1047559
        %v1071 = vsel %vm1070, %v993, %v1069
        %1073 = vrot.lane.b32.xlu0 %v1071, 120
        %v1074 = vpop.permute.xlu0 %1073
        %v1076 = vrot.slane %v1074, 1
        %v1077 = vrot.slane %v1074, 2
        %v1078 = vrot.slane %v1074, 3
        %v1079 = vrot.slane %v1074, 4
        %v1080 = vrot.slane %v1074, 5
        %v1081 = vrot.slane %v1074, 6
        %v1082 = vrot.slane %v1074, 7
        %v1091 = vmax.f32 %v944, %v1074
        %v1092 = vmax.f32 %v951, %v1076
        %v1093 = vmax.f32 %v958, %v1077
        %v1094 = vmax.f32 %v965, %v1078
        %v1095 = vmax.f32 %v972, %v1079
        %v1096 = vmax.f32 %v979, %v1080
        %v1097 = vmax.f32 %v986, %v1081
        %v1098 = vmax.f32 %v993, %v1082
        %v1107 = vrot.slane %v1092, 7
        %v1108 = vsel %vm1058, %v1107, %v1091
        %v1109 = vrot.slane %v1093, 6
        %v1110 = vsel %vm1060, %v1109, %v1108
        %v1111 = vrot.slane %v1094, 5
        %v1112 = vsel %vm1062, %v1111, %v1110
        %v1113 = vrot.slane %v1095, 4
        %v1114 = vsel %vm1064, %v1113, %v1112
        %v1115 = vrot.slane %v1096, 3
        %v1116 = vsel %vm1066, %v1115, %v1114
        %v1117 = vrot.slane %v1097, 2
        %v1118 = vsel %vm1068, %v1117, %v1116
        %v1119 = vrot.slane %v1098, 1
        %v1120 = vsel %vm1070, %v1119, %v1118
        %1122 = vrot.lane.b32.xlu0 %v1120, 112
        %v1123 = vpop.permute.xlu0 %1122
        %v1125 = vrot.slane %v1123, 1
        %v1126 = vrot.slane %v1123, 2
        %v1127 = vrot.slane %v1123, 3
        %v1128 = vrot.slane %v1123, 4
        %v1129 = vrot.slane %v1123, 5
        %v1130 = vrot.slane %v1123, 6
        %v1131 = vrot.slane %v1123, 7
        %v1140 = vmax.f32 %v1091, %v1123
        %v1141 = vmax.f32 %v1092, %v1125
        %v1142 = vmax.f32 %v1093, %v1126
        %v1143 = vmax.f32 %v1094, %v1127
        %v1144 = vmax.f32 %v1095, %v1128
        %v1145 = vmax.f32 %v1096, %v1129
        %v1146 = vmax.f32 %v1097, %v1130
        %v1147 = vmax.f32 %v1098, %v1131
        %v1156 = vsel %vm1058, %v1007, %v1000
        %v1157 = vsel %vm1060, %v1014, %v1156
        %v1158 = vsel %vm1062, %v1021, %v1157
        %v1159 = vsel %vm1064, %v1028, %v1158
        %v1160 = vsel %vm1066, %v1035, %v1159
        %v1161 = vsel %vm1068, %v1042, %v1160
        %v1162 = vsel %vm1070, %v1049, %v1161
        %1164 = vrot.lane.b32.xlu0 %v1162, 120
        %v1165 = vpop.permute.xlu0 %1164
        %v1167 = vrot.slane %v1165, 1
        %v1168 = vrot.slane %v1165, 2
        %v1169 = vrot.slane %v1165, 3
        %v1170 = vrot.slane %v1165, 4
        %v1171 = vrot.slane %v1165, 5
        %v1172 = vrot.slane %v1165, 6
        %v1173 = vrot.slane %v1165, 7
        %v1182 = vadd.f32 %v1000, %v1165
        %v1183 = vadd.f32 %v1007, %v1167
        %v1184 = vadd.f32 %v1014, %v1168
        %v1185 = vadd.f32 %v1021, %v1169
        %v1186 = vadd.f32 %v1028, %v1170
        %v1187 = vadd.f32 %v1035, %v1171
        %v1188 = vadd.f32 %v1042, %v1172
        %v1189 = vadd.f32 %v1049, %v1173
        %v1198 = vrot.slane %v1183, 7
        %v1199 = vsel %vm1058, %v1198, %v1182
        %v1200 = vrot.slane %v1184, 6
        %v1201 = vsel %vm1060, %v1200, %v1199
        %v1202 = vrot.slane %v1185, 5
        %v1203 = vsel %vm1062, %v1202, %v1201
        %v1204 = vrot.slane %v1186, 4
        %v1205 = vsel %vm1064, %v1204, %v1203
        %v1206 = vrot.slane %v1187, 3
        %v1207 = vsel %vm1066, %v1206, %v1205
        %v1208 = vrot.slane %v1188, 2
        %v1209 = vsel %vm1068, %v1208, %v1207
        %v1210 = vrot.slane %v1189, 1
        %v1211 = vsel %vm1070, %v1210, %v1209
        %1213 = vrot.lane.b32.xlu0 %v1211, 112
        %v1214 = vpop.permute.xlu0 %1213
        %v1216 = vrot.slane %v1214, 1
        %v1217 = vrot.slane %v1214, 2
        %v1218 = vrot.slane %v1214, 3
        %v1219 = vrot.slane %v1214, 4
        %v1220 = vrot.slane %v1214, 5
        %v1221 = vrot.slane %v1214, 6
        %v1222 = vrot.slane %v1214, 7
        %v1231 = vadd.f32 %v1182, %v1214
        %v1232 = vadd.f32 %v1183, %v1216
        %v1233 = vadd.f32 %v1184, %v1217
        %v1234 = vadd.f32 %v1185, %v1218
        %v1235 = vadd.f32 %v1186, %v1219
        %v1236 = vadd.f32 %v1187, %v1220
        %v1237 = vadd.f32 %v1188, %v1221
        %v1238 = vadd.f32 %v1189, %v1222
        %v1239 = vmul.f32 %v1231, 0.0625
        %v1240 = vmul.f32 %v1232, 0.0625
        %v1241 = vmul.f32 %v1233, 0.0625
        %v1242 = vmul.f32 %v1234, 0.0625
        %v1243 = vmul.f32 %v1235, 0.0625
        %v1244 = vmul.f32 %v1236, 0.0625
        %v1245 = vmul.f32 %v1237, 0.0625
        %v1246 = vmul.f32 %v1238, 0.0625
        %v1247 = vld [vmem:[%s463] sm:$0x1]
        %v1248 = vsub.f32 %v1140, %v1239
        %v1249 = vsub.f32 %v1141, %v1240
        %v1250 = vsub.f32 %v1142, %v1241
        %v1251 = vsub.f32 %v1143, %v1242
        %v1252 = vsub.f32 %v1144, %v1243
        %v1253 = vsub.f32 %v1145, %v1244
        %v1254 = vsub.f32 %v1146, %v1245
        %v1255 = vsub.f32 %v1147, %v1246
        %v1257 = vlaneseq
        %v1258 = vshrl.u32 %v1257, 7
        %v1259 = vsub.s32 0, %v1258
        %v1260 = vrot.slane %v1247, %v1259
        %v1270 = vrot.slane %v1249, 7
        %v1271 = vsel %vm1058, %v1270, %v1248
        %v1272 = vrot.slane %v1250, 6
        %v1273 = vsel %vm1060, %v1272, %v1271
        %v1274 = vrot.slane %v1251, 5
        %v1275 = vsel %vm1062, %v1274, %v1273
        %v1276 = vrot.slane %v1252, 4
        %v1277 = vsel %vm1064, %v1276, %v1275
        %v1278 = vrot.slane %v1253, 3
        %v1279 = vsel %vm1066, %v1278, %v1277
        %v1280 = vrot.slane %v1254, 2
        %v1281 = vsel %vm1068, %v1280, %v1279
        %v1282 = vrot.slane %v1255, 1
        %v1283 = vsel %vm1070, %v1282, %v1281
        %v1285 = vmul.f32 %v1260, %v1283
        %v1287 = vrot.slane %v1285, 1
        %v1288 = vrot.slane %v1285, 2
        %v1289 = vrot.slane %v1285, 3
        %v1290 = vrot.slane %v1285, 4
        %v1291 = vrot.slane %v1285, 5
        %v1292 = vrot.slane %v1285, 6
        %v1293 = vrot.slane %v1285, 7
        %v1302 = vadd.f32 %v1239, %v1285
        %v1303 = vadd.f32 %v1240, %v1287
        %v1304 = vadd.f32 %v1241, %v1288
        %v1305 = vadd.f32 %v1242, %v1289
        %v1306 = vadd.f32 %v1243, %v1290
        %v1307 = vadd.f32 %v1244, %v1291
        %v1308 = vadd.f32 %v1245, %v1292
        %v1309 = vadd.f32 %v1246, %v1293
        %v1318 = vrot.slane %v1303, 7
        %v1319 = vsel %vm1058, %v1318, %v1302
        %v1320 = vrot.slane %v1304, 6
        %v1321 = vsel %vm1060, %v1320, %v1319
        %v1322 = vrot.slane %v1305, 5
        %v1323 = vsel %vm1062, %v1322, %v1321
        %v1324 = vrot.slane %v1306, 4
        %v1325 = vsel %vm1064, %v1324, %v1323
        %v1326 = vrot.slane %v1307, 3
        %v1327 = vsel %vm1066, %v1326, %v1325
        %v1328 = vrot.slane %v1308, 2
        %v1329 = vsel %vm1068, %v1328, %v1327
        %v1330 = vrot.slane %v1309, 1
        %v1331 = vsel %vm1070, %v1330, %v1329
        %v1334 = vunpack.c.l.s4 1935823168
        %v1335 = vunpack.c.0.s8 %v1334
        %v1336 = vlaneseq
        %v1337 = vshrl.u32 %v1336, 7
        %v1338 = vsub.s32 %v1335, %v1337
        %v1339 = vrot.slane %v1331, %v1338
        %v1340 = vld [vmem:[%s468] sm:$0xff]
        %v1341 = vld [vmem:[%s468 + $0x8] sm:$0xff]
        %v1342 = vld [vmem:[%s468 + $0x10] sm:$0xff]
        %v1343 = vld [vmem:[%s468 + $0x18] sm:$0xff]
        %v1344 = vld [vmem:[%s468 + $0x20] sm:$0xff]
        %v1345 = vld [vmem:[%s468 + $0x28] sm:$0xff]
        %v1346 = vld [vmem:[%s468 + $0x30] sm:$0xff]
        %v1347 = vld [vmem:[%s468 + $0x38] sm:$0xff]
        %v1348 = vld [vmem:[%s468 + $0x40] sm:$0xff]
        %v1349 = vld [vmem:[%s468 + $0x48] sm:$0xff]
        %v1350 = vld [vmem:[%s468 + $0x50] sm:$0xff]
        %v1351 = vld [vmem:[%s468 + $0x58] sm:$0xff]
        %v1352 = vld [vmem:[%s468 + $0x60] sm:$0xff]
        %v1353 = vld [vmem:[%s468 + $0x68] sm:$0xff]
        %v1354 = vld [vmem:[%s468 + $0x70] sm:$0xff]
        %v1355 = vld [vmem:[%s468 + $0x78] sm:$0xff]
        %v1356 = vld [vmem:[%s468 + $0x80] sm:$0xff]
        %v1357 = vld [vmem:[%s468 + $0x88] sm:$0xff]
        %v1358 = vld [vmem:[%s468 + $0x90] sm:$0xff]
        %v1359 = vld [vmem:[%s468 + $0x98] sm:$0xff]
        %v1360 = vld [vmem:[%s468 + $0xa0] sm:$0xff]
        %v1361 = vld [vmem:[%s468 + $0xa8] sm:$0xff]
        %v1362 = vld [vmem:[%s468 + $0xb0] sm:$0xff]
        %v1363 = vld [vmem:[%s468 + $0xb8] sm:$0xff]
        %v1364 = vld [vmem:[%s468 + $0xc0] sm:$0xff]
        %v1365 = vld [vmem:[%s468 + $0xc8] sm:$0xff]
        %v1366 = vld [vmem:[%s468 + $0xd0] sm:$0xff]
        %v1367 = vld [vmem:[%s468 + $0xd8] sm:$0xff]
        %v1368 = vld [vmem:[%s468 + $0xe0] sm:$0xff]
        %v1369 = vld [vmem:[%s468 + $0xe8] sm:$0xff]
        %v1370 = vld [vmem:[%s468 + $0xf0] sm:$0xff]
        %v1371 = vld [vmem:[%s468 + $0xf8] sm:$0xff]
        %v1372 = vld [vmem:[%s468 + $0x100] sm:$0xff]
        %v1373 = vld [vmem:[%s468 + $0x108] sm:$0xff]
        %v1374 = vld [vmem:[%s468 + $0x110] sm:$0xff]
        %v1375 = vld [vmem:[%s468 + $0x118] sm:$0xff]
        %v1376 = vld [vmem:[%s468 + $0x120] sm:$0xff]
        %v1377 = vld [vmem:[%s468 + $0x128] sm:$0xff]
        %v1378 = vld [vmem:[%s468 + $0x130] sm:$0xff]
        %v1379 = vld [vmem:[%s468 + $0x138] sm:$0xff]
        %v1380 = vld [vmem:[%s468 + $0x140] sm:$0xff]
        %v1381 = vld [vmem:[%s468 + $0x148] sm:$0xff]
        %v1382 = vld [vmem:[%s468 + $0x150] sm:$0xff]
        %v1383 = vld [vmem:[%s468 + $0x158] sm:$0xff]
        %v1384 = vld [vmem:[%s468 + $0x160] sm:$0xff]
        %v1385 = vld [vmem:[%s468 + $0x168] sm:$0xff]
        %v1386 = vld [vmem:[%s468 + $0x170] sm:$0xff]
        %v1387 = vld [vmem:[%s468 + $0x178] sm:$0xff]
        %v1388 = vld [vmem:[%s468 + $0x180] sm:$0xff]
        %v1389 = vld [vmem:[%s468 + $0x188] sm:$0xff]
        %v1390 = vld [vmem:[%s468 + $0x190] sm:$0xff]
        %v1391 = vld [vmem:[%s468 + $0x198] sm:$0xff]
        %v1392 = vld [vmem:[%s468 + $0x1a0] sm:$0xff]
        %v1393 = vld [vmem:[%s468 + $0x1a8] sm:$0xff]
        %v1394 = vld [vmem:[%s468 + $0x1b0] sm:$0xff]
        %v1395 = vld [vmem:[%s468 + $0x1b8] sm:$0xff]
        %v1396 = vld [vmem:[%s468 + $0x1c0] sm:$0xff]
        %v1397 = vld [vmem:[%s468 + $0x1c8] sm:$0xff]
        %v1398 = vld [vmem:[%s468 + $0x1d0] sm:$0xff]
        %v1399 = vld [vmem:[%s468 + $0x1d8] sm:$0xff]
        %v1400 = vld [vmem:[%s468 + $0x1e0] sm:$0xff]
        %v1401 = vld [vmem:[%s468 + $0x1e8] sm:$0xff]
        %v1402 = vld [vmem:[%s468 + $0x1f0] sm:$0xff]
        %v1403 = vld [vmem:[%s468 + $0x1f8] sm:$0xff]
        %v1404 = vld [vmem:[%s471] sm:$0x1]
        %v1406 = vlaneseq
        %v1407 = vshrl.u32 %v1406, 7
        %v1408 = vsub.s32 0, %v1407
        %v1409 = vrot.slane %v1404, %v1408
        %v1412 = vcombine.high %v1339, %v1339
        %v1414 = vunpack.c.l.s4 1983009808
        %v1415 = vunpack.c.0.s8 %v1414
        %v1416 = vlaneseq
        %v1417 = vshrl.u32 %v1416, 7
        %v1418 = vsub.s32 %v1415, %v1417
        %v1419 = vrot.slane %v1339, %v1418
        %v1421 = vunpack.c.l.s4 1983009808
        %v1422 = vunpack.c.0.s8 %v1421
        %v1423 = vlaneseq
        %v1424 = vshrl.u32 %v1423, 7
        %v1425 = vsub.s32 %v1422, %v1424
        %v1426 = vrot.slane %v1412, %v1425
        %v1427 = vcombine.high %v1419, %v1419
        %v1428 = vcombine.high %v1426, %v1426
        %1433 = vmatprep.subr.mxu0 0.0
        %1434 = vmatpush1.msra.mxu0 %v1340
        %1435 = vmatprep.subr.mxu0 0.0
        %1436 = vmatpush1.msra.mxu0 %v1341
        %1437 = vmatprep.subr.mxu0 0.0
        %1438 = vmatpush1.msra.mxu0 %v1342
        %1439 = vmatprep.subr.mxu0 0.0
        %1440 = vmatpush1.msra.mxu0 %v1343
        %1441 = vmatprep.subr.mxu0 0.0
        %1442 = vmatpush1.msra.mxu0 %v1344
        %1443 = vmatprep.subr.mxu0 0.0
        %1444 = vmatpush1.msra.mxu0 %v1345
        %1445 = vmatprep.subr.mxu0 0.0
        %1446 = vmatpush1.msra.mxu0 %v1346
        %1447 = vmatprep.subr.mxu0 0.0
        %1448 = vmatpush1.msra.mxu0 %v1347
        %1449 = vmatprep.subr.mxu0 0.0
        %1450 = vmatpush1.msra.mxu0 %v1348
        %1451 = vmatprep.subr.mxu0 0.0
        %1452 = vmatpush1.msra.mxu0 %v1349
        %1453 = vmatprep.subr.mxu0 0.0
        %1454 = vmatpush1.msra.mxu0 %v1350
        %1455 = vmatprep.subr.mxu0 0.0
        %1456 = vmatpush1.msra.mxu0 %v1351
        %1457 = vmatprep.subr.mxu0 0.0
        %1458 = vmatpush1.msra.mxu0 %v1352
        %1459 = vmatprep.subr.mxu0 0.0
        %1460 = vmatpush1.msra.mxu0 %v1353
        %1461 = vmatprep.subr.mxu0 0.0
        %1462 = vmatpush1.msra.mxu0 %v1354
        %1463 = vmatprep.subr.mxu0 0.0
        %1464 = vmatpush1.msra.mxu0 %v1355
        %1465 = vmatprep.subr.mxu0 0.0
        %1466 = vmatpush1.msra.mxu0 %v1356
        %1467 = vmatprep.subr.mxu0 0.0
        %1468 = vmatpush1.msra.mxu0 %v1357
        %1469 = vmatprep.subr.mxu0 0.0
        %1470 = vmatpush1.msra.mxu0 %v1358
        %1471 = vmatprep.subr.mxu0 0.0
        %1472 = vmatpush1.msra.mxu0 %v1359
        %1473 = vmatprep.subr.mxu0 0.0
        %1474 = vmatpush1.msra.mxu0 %v1360
        %1475 = vmatprep.subr.mxu0 0.0
        %1476 = vmatpush1.msra.mxu0 %v1361
        %1477 = vmatprep.subr.mxu0 0.0
        %1478 = vmatpush1.msra.mxu0 %v1362
        %1479 = vmatprep.subr.mxu0 0.0
        %1480 = vmatpush1.msra.mxu0 %v1363
        %1481 = vmatprep.subr.mxu0 0.0
        %1482 = vmatpush1.msra.mxu0 %v1364
        %1483 = vmatprep.subr.mxu0 0.0
        %1484 = vmatpush1.msra.mxu0 %v1365
        %1485 = vmatprep.subr.mxu0 0.0
        %1486 = vmatpush1.msra.mxu0 %v1366
        %1487 = vmatprep.subr.mxu0 0.0
        %1488 = vmatpush1.msra.mxu0 %v1367
        %1489 = vmatprep.subr.mxu0 0.0
        %1490 = vmatpush1.msra.mxu0 %v1368
        %1491 = vmatprep.subr.mxu0 0.0
        %1492 = vmatpush1.msra.mxu0 %v1369
        %1493 = vmatprep.subr.mxu0 0.0
        %1494 = vmatpush1.msra.mxu0 %v1370
        %1495 = vmatprep.subr.mxu0 0.0
        %1496 = vmatpush1.msra.mxu0 %v1371
        %1497 = vmatprep.mubr.f32.mxu0 %v1427
        %1498 = vmatmul.mubr.f32.gmra.mrb[0].mxu0 %v1419
        %v1499 = vpop.f32.mrb[0].mxu0
        %v1500 = vadd.f32 %v1409, %v1499
        %v1501 = vpop.f32.mrb[0].mxu0
        %1502 = vdwg.mxu0
        %1503 = vmatprep.subr.mxu0 0.0
        %1504 = vmatpush1.msra.mxu0 %v1372
        %1505 = vmatprep.subr.mxu0 0.0
        %1506 = vmatpush1.msra.mxu0 %v1373
        %1507 = vmatprep.subr.mxu0 0.0
        %1508 = vmatpush1.msra.mxu0 %v1374
        %1509 = vmatprep.subr.mxu0 0.0
        %1510 = vmatpush1.msra.mxu0 %v1375
        %1511 = vmatprep.subr.mxu0 0.0
        %1512 = vmatpush1.msra.mxu0 %v1376
        %1513 = vmatprep.subr.mxu0 0.0
        %1514 = vmatpush1.msra.mxu0 %v1377
        %1515 = vmatprep.subr.mxu0 0.0
        %1516 = vmatpush1.msra.mxu0 %v1378
        %1517 = vmatprep.subr.mxu0 0.0
        %1518 = vmatpush1.msra.mxu0 %v1379
        %1519 = vmatprep.subr.mxu0 0.0
        %1520 = vmatpush1.msra.mxu0 %v1380
        %1521 = vmatprep.subr.mxu0 0.0
        %1522 = vmatpush1.msra.mxu0 %v1381
        %1523 = vmatprep.subr.mxu0 0.0
        %1524 = vmatpush1.msra.mxu0 %v1382
        %1525 = vmatprep.subr.mxu0 0.0
        %1526 = vmatpush1.msra.mxu0 %v1383
        %1527 = vmatprep.subr.mxu0 0.0
        %1528 = vmatpush1.msra.mxu0 %v1384
        %1529 = vmatprep.subr.mxu0 0.0
        %1530 = vmatpush1.msra.mxu0 %v1385
        %1531 = vmatprep.subr.mxu0 0.0
        %1532 = vmatpush1.msra.mxu0 %v1386
        %1533 = vmatprep.subr.mxu0 0.0
        %1534 = vmatpush1.msra.mxu0 %v1387
        %1535 = vmatprep.subr.mxu0 0.0
        %1536 = vmatpush1.msra.mxu0 %v1388
        %1537 = vmatprep.subr.mxu0 0.0
        %1538 = vmatpush1.msra.mxu0 %v1389
        %1539 = vmatprep.subr.mxu0 0.0
        %1540 = vmatpush1.msra.mxu0 %v1390
        %1541 = vmatprep.subr.mxu0 0.0
        %1542 = vmatpush1.msra.mxu0 %v1391
        %1543 = vmatprep.subr.mxu0 0.0
        %1544 = vmatpush1.msra.mxu0 %v1392
        %1545 = vmatprep.subr.mxu0 0.0
        %1546 = vmatpush1.msra.mxu0 %v1393
        %1547 = vmatprep.subr.mxu0 0.0
        %1548 = vmatpush1.msra.mxu0 %v1394
        %1549 = vmatprep.subr.mxu0 0.0
        %1550 = vmatpush1.msra.mxu0 %v1395
        %1551 = vmatprep.subr.mxu0 0.0
        %1552 = vmatpush1.msra.mxu0 %v1396
        %1553 = vmatprep.subr.mxu0 0.0
        %1554 = vmatpush1.msra.mxu0 %v1397
        %1555 = vmatprep.subr.mxu0 0.0
        %1556 = vmatpush1.msra.mxu0 %v1398
        %1557 = vmatprep.subr.mxu0 0.0
        %1558 = vmatpush1.msra.mxu0 %v1399
        %1559 = vmatprep.subr.mxu0 0.0
        %1560 = vmatpush1.msra.mxu0 %v1400
        %1561 = vmatprep.subr.mxu0 0.0
        %1562 = vmatpush1.msra.mxu0 %v1401
        %1563 = vmatprep.subr.mxu0 0.0
        %1564 = vmatpush1.msra.mxu0 %v1402
        %1565 = vmatprep.subr.mxu0 0.0
        %1566 = vmatpush1.msra.mxu0 %v1403
        %1567 = vmatprep.mubr.f32.mxu0 %v1428
        %1568 = vmatmul.mubr.f32.gmra.mrb[0].mxu0 %v1426
        %v1569 = vpop.f32.mrb[0].mxu0
        %v1570 = vadd.f32 %v1500, %v1569
        %v1571 = vpop.f32.mrb[0].mxu0
        %1572 = vdwg.mxu0
        %1573 = vst [vmem:[%s422] sm:$0x3] %v1570
        %s1574 = sand.u32 %s245, 1
        %s1575 = scalar_lea.sflag [#allocation18], %s1574
        %s1576 = sand.u32 %s245, 1
        %s1577 = smul.addr %s1576, 2
        %s1578 = scalar_lea.vmem [#allocation17], %s1577
        // Predicated region
        $region53: #{internal_classifier_forward.2} parent=51 // pred_check
          %p1579 = pneg %p255
        $region54: #{internal_classifier_forward.2} parent=51 // pred_check_branch
          %1581 = sbr.rel (%p1579) target = $region56
        $region55: #{internal_classifier_forward.2} parent=51 // pred_region
          %s1583 = ssub.s32 32, 32
          %1584 = vsyncadd %s1575, %s1583
          %s1585 = smul.addr %s26, 32
          %s1586 = scalar_lea.hbm %s9, %s1585
          %s1588 = sshll.u32 %s1578, 4
          %s1589 = int_to_ptr.vmem [resolvable:$true] %s1588
          %1591 = dma.vmem_to_hbm [thread:$0]  %s1589, 32, %s1586, %s1575
        $region56: #{internal_classifier_forward.2} parent=51 // pred_fallthru
          _
      $region52: #{internal_classifier_forward.2} parent=5 // pred_fallthru
        _
      %p1592 = scmp.le.s32.totalorder 2, %s21
      // Predicated region
      $region57: #{internal_classifier_forward.2} parent=5 // pred_check
        %p1593 = pneg %p1592
      $region58: #{internal_classifier_forward.2} parent=5 // pred_check_branch
        %1595 = sbr.rel (%p1593) target = $region60
      $region59: #{internal_classifier_forward.2} parent=5 // pred_region
        %s1596 = ssub.s32 %s21, 2
        // Predicated region
        $region61: #{internal_classifier_forward.2} parent=59 // pred_check
          %p1597 = pneg %p261
        $region62: #{internal_classifier_forward.2} parent=59 // pred_check_branch
          %1599 = sbr.rel (%p1597) target = $region64
        $region63: #{internal_classifier_forward.2} parent=59 // pred_region
          %s1600 = sand.u32 %s246, 1
          %s1601 = scalar_lea.sflag [#allocation18], %s1600
          %s1602 = sand.u32 %s246, 1
          %s1603 = smul.addr %s1602, 2
          %s1604 = scalar_lea.vmem [#allocation17], %s1603
          %1605 = dma.done %s1601, 32
        $region64: #{internal_classifier_forward.2} parent=59 // pred_fallthru
          _
      $region60: #{internal_classifier_forward.2} parent=5 // pred_fallthru
        _
    $region6: #{internal_classifier_forward.2} parent=1 // loop_footer
      %s25 = sadd.s32 1, %s21
    $region7: #{internal_classifier_forward.2} parent=1 // loop_footer_branch
      %20 = sbr.rel target = $region3
    $region8: #{internal_classifier_forward.2} parent=1 // loop_exit
      _
    %1606 = vsyncpa [#allocation18], 1
    %s1607 = scalar_lea.sflag [#allocation18], 1
    %1608 = vsyncpa %s1607, 1

</llo_original>
